<compile_context>
chip_gen: v7x
topology: tpu7x:2x2x1
jax: 0.10.0
libtpu: 0.0.40
codegen_flags: <defaults>
</compile_context>

<pallas_src>
import functools

import jax
import jax.numpy as jnp
from jax import lax
from jax.experimental import pallas as pl
from jax.experimental.pallas import tpu as pltpu

K = 7
PAD = 3            # per-conv "same" padding
HALO = 2 * PAD     # x halo needed by the fused conv1 -> conv2 pair


def _pick_tile(L, N):
    """Largest lane-dense tile dividing L, preferring >=2 total grid steps (v7x 2 TCs)."""
    cands = (4096, 2048, 1024, 512, 256, 128)
    for t in cands:
        if L % t == 0 and N * (L // t) >= 2:
            return t
    for t in cands:
        if L % t == 0:
            return t
    # TODO(synk): for awkward L (no 128 divisor), pad the out spec up to a multiple
    # of 128 and mask the tail in-kernel to keep stores lane-dense.
    return L


def _fused_block_kernel(x_ref, w1_ref, w2_ref, b1_ref, b2_ref, out_ref, win_ref,
                        *, L, tile_l, cin, cout, n_tiles):
    # x_ref:  (1, Cin, L)     full un-padded f32 row, resident across L-tiles
    # w1_ref: (Cout, K*Cin)   f32, BN1 scale folded in, contraction dim last
    # w2_ref: (Cout, K*Cout)  f32, BN2 scale folded in
    # b1_ref/b2_ref: (Cout,1) f32 folded BN shifts
    # out_ref: (1, Cout, tile_l)
    # win_ref: VMEM scratch (Cin, tile_l + 2*HALO) — halo-extended conv1 window
    t = pl.program_id(1)
    w_ext = tile_l + 2 * HALO      # conv1 input window width for this tile
    w_mid = tile_l + 2 * PAD       # conv1 output width incl. the halo conv2 needs

    if n_tiles == 1:
        start = 0                                       # fully static path
    else:
        start = pl.multiple_of(t * tile_l, tile_l)      # lane-aligned tile offset

    # main chunk: conv-window centre AND the f32 residual (read once, used twice)
    main = x_ref[0, :, pl.ds(start, tile_l)]            # (Cin, tile_l) f32

    # left/right halo columns (HALO each); zeroed at the row ends, which reproduces
    # conv1's zero padding of x without any host-side padded copy.
    lsrc = x_ref[0, :, pl.ds(jnp.maximum(start - HALO, 0), HALO)]
    rsrc = x_ref[0, :, pl.ds(jnp.minimum(start + tile_l, L - HALO), HALO)]
    lh = jnp.where(t > 0, lsrc, 0.0)
    rh = jnp.where(t < n_tiles - 1, rsrc, 0.0)

    # assemble the halo-extended window in VMEM scratch
    win_ref[:, 0:HALO] = lh
    win_ref[:, HALO:HALO + tile_l] = main
    win_ref[:, HALO + tile_l:] = rh
    xw = win_ref[...]                                   # (Cin, w_ext) f32

    w1 = w1_ref[...]
    w2 = w2_ref[...]

    # ---- stage 1: conv1 + bn1 + relu on the halo-extended window (f32 MXU) ----
    acc1 = jnp.zeros((cout, w_mid), jnp.float32)
    for k in range(K):                                   # static unroll over taps
        acc1 += jnp.dot(w1[:, k * cin:(k + 1) * cin], xw[:, k:k + w_mid],
                        preferred_element_type=jnp.float32)
    mid = jnp.maximum(acc1 + b1_ref[...], 0.0)

    # conv2 sees ZERO padding outside [0, L): zero-mask halo columns that fall outside.
    g = start - PAD + lax.broadcasted_iota(jnp.int32, (1, w_mid), 1)
    mid = jnp.where((g >= 0) & (g < L), mid, 0.0)
    # TODO(synk): nn.Dropout(0.2) is identity in eval mode; training-mode RNG
    # masking (pltpu.prng_seed / prng_random_bits) not implemented here.

    # ---- stage 2: conv2 + bn2 + residual + relu ----
    acc2 = jnp.zeros((cout, tile_l), jnp.float32)
    for k in range(K):
        acc2 += jnp.dot(w2[:, k * cout:(k + 1) * cout], mid[:, k:k + tile_l],
                        preferred_element_type=jnp.float32)
    out = acc2 + b2_ref[...] + main                      # residual add in f32
    out_ref[0] = jnp.maximum(out, 0.0).astype(out_ref.dtype)


def fold_bn(gamma, beta, mean, var, eps=1e-5):
    scale = gamma / jnp.sqrt(var + eps)
    shift = beta - mean * scale
    return scale, shift


def _fold_weight(w, scale):
    """(Cout, Cin, K) conv weight * per-Cout BN scale -> lane-dense (Cout, K*Cin) f32."""
    cout, cin, k = w.shape
    ws = w * scale[:, None, None]
    return jnp.transpose(ws, (0, 2, 1)).reshape(cout, k * cin).astype(jnp.float32)


def basic_block_forward(x, params, out_dtype=jnp.bfloat16):
    """Fused Pallas implementation of BasicBlock.forward (eval mode, stride=1)."""
    N, C, L = x.shape
    assert params["w1"].shape == (C, C, K) and params["w2"].shape == (C, C, K)
    assert L >= HALO

    tile_l = _pick_tile(L, N)
    T = L // tile_l

    s1, b1 = fold_bn(params["bn1_gamma"], params["bn1_beta"],
                     params["bn1_mean"], params["bn1_var"])
    s2, b2 = fold_bn(params["bn2_gamma"], params["bn2_beta"],
                     params["bn2_mean"], params["bn2_var"])

    w1_2d = _fold_weight(params["w1"], s1)               # (C, K*C) f32
    w2_2d = _fold_weight(params["w2"], s2)               # (C, K*C) f32
    b1c = b1.reshape(C, 1).astype(jnp.float32)
    b2c = b2.reshape(C, 1).astype(jnp.float32)
    x = x.astype(jnp.float32)                            # single input stream

    kernel = functools.partial(_fused_block_kernel, L=L, tile_l=tile_l,
                               cin=C, cout=C, n_tiles=T)

    # Explicit VMEM budget (double-buffered x row + out tile, window scratch, weights)
    out_itemsize = jnp.dtype(out_dtype).itemsize
    est = (2 * C * L * 4                       # resident x row (double-buffered)
           + 2 * C * tile_l * out_itemsize     # output tile  (double-buffered)
           + C * (tile_l + 2 * HALO) * 4       # window scratch
           + 4 * (C * K * C * 4) + 4 * C * 4)  # weights + biases
    vmem_limit = min(max(4 * est + (2 << 20), 16 << 20), 64 << 20)

    return pl.pallas_call(
        kernel,
        out_shape=jax.ShapeDtypeStruct((N, C, L), out_dtype),
        grid_spec=pltpu.PrefetchScalarGridSpec(
            num_scalar_prefetch=0,
            grid=(N, T),
            in_specs=[
                # full f32 row; index_map constant in t -> resident, DMA'd once per
                # batch element, used for both conv input and residual.
                pl.BlockSpec((1, C, L), lambda n, t: (n, 0, 0)),
                pl.BlockSpec((C, K * C), lambda n, t: (0, 0)),
                pl.BlockSpec((C, K * C), lambda n, t: (0, 0)),
                pl.BlockSpec((C, 1), lambda n, t: (0, 0)),
                pl.BlockSpec((C, 1), lambda n, t: (0, 0)),
            ],
            out_specs=pl.BlockSpec((1, C, tile_l), lambda n, t: (n, 0, t)),
            scratch_shapes=[pltpu.VMEM((C, tile_l + 2 * HALO), jnp.float32)],
        ),
        # Every tile is self-contained -> both axes independent / shardable across
        # the 2 TensorCores on v7x.
        compiler_params=pltpu.CompilerParams(
            dimension_semantics=("parallel", "parallel"),
            vmem_limit_bytes=vmem_limit),
    )(x, w1_2d, w2_2d, b1c, b2c)


def reference_forward(x, params):
    """Pure-JAX f32 reference for correctness check."""
    def conv(x_, w_):
        return lax.conv_general_dilated(
            x_, w_, window_strides=(1,), padding=[(PAD, PAD)],
            dimension_numbers=("NCW", "OIW", "NCW"))
    s1, b1 = fold_bn(params["bn1_gamma"], params["bn1_beta"],
                     params["bn1_mean"], params["bn1_var"])
    s2, b2 = fold_bn(params["bn2_gamma"], params["bn2_beta"],
                     params["bn2_mean"], params["bn2_var"])
    out = jnp.maximum(conv(x, params["w1"]) * s1[None, :, None]
                      + b1[None, :, None], 0.0)
    out = conv(out, params["w2"]) * s2[None, :, None] + b2[None, :, None]
    return jnp.maximum(out + x, 0.0)


if __name__ == "__main__":
    # batch=2, inplanes=planes=4, length=256 (one lane-dense tile of 256 per row).
    N, C, L = 2, 4, 256
    key = jax.random.PRNGKey(0)
    k0, k1, k2, k3, k4, k5, k6 = jax.random.split(key, 7)

    x = jax.random.normal(k0, (N, C, L), dtype=jnp.float32)
    params = {
        "w1": jax.random.normal(k1, (C, C, K), jnp.float32) * 0.1,
        "w2": jax.random.normal(k2, (C, C, K), jnp.float32) * 0.1,
        "bn1_gamma": jax.random.uniform(k3, (C,), jnp.float32, 0.5, 1.5),
        "bn1_beta": jax.random.normal(k4, (C,), jnp.float32) * 0.1,
        "bn1_mean": jnp.zeros((C,), jnp.float32),
        "bn1_var": jnp.ones((C,), jnp.float32),
        "bn2_gamma": jax.random.uniform(k5, (C,), jnp.float32, 0.5, 1.5),
        "bn2_beta": jax.random.normal(k6, (C,), jnp.float32) * 0.1,
        "bn2_mean": jnp.zeros((C,), jnp.float32),
        "bn2_var": jnp.ones((C,), jnp.float32),
    }

    out = jax.block_until_ready(basic_block_forward(x, params))
    ref = jax.block_until_ready(reference_forward(x, params))
    assert out.shape == (N, C, L)
    # f32 matmuls; only the final output store is bf16 -> bf16-rounding tolerance.
    assert jnp.allclose(out.astype(jnp.float32), ref, atol=3e-2, rtol=3e-2), \
        "mismatch vs reference"
    print("KERNEL_OK")
</pallas_src>

<mosaic_0001>
module attributes {stable_mosaic.version = 11 : i64} {
  func.func @_fused_block_kernel(%arg0: i32, %arg1: i32, %arg2: memref<1x4x256xf32, #tpu.memory_space<vmem>>, %arg3: memref<4x28xf32, #tpu.memory_space<vmem>>, %arg4: memref<4x28xf32, #tpu.memory_space<vmem>>, %arg5: memref<4x1xf32, #tpu.memory_space<vmem>>, %arg6: memref<4x1xf32, #tpu.memory_space<vmem>>, %arg7: memref<1x4x256xbf16, #tpu.memory_space<vmem>>, %arg8: memref<4x268xf32, #tpu.memory_space<vmem>>) attributes {dimension_semantics = [#tpu.dimension_semantics<parallel>, #tpu.dimension_semantics<parallel>], iteration_bounds = array<i64: 2, 1>, scalar_prefetch = 0 : i64, scratch_operands = 1 : i64, tpu.core_type = #tpu.core_type<tc>, window_params = [{transform_indices = @transform_0, window_bounds = array<i64: 1, 4, 256>}, {pipeline_mode = #tpu.pipeline_mode<synchronous>, transform_indices = @transform_1, window_bounds = array<i64: 4, 28>}, {pipeline_mode = #tpu.pipeline_mode<synchronous>, transform_indices = @transform_2, window_bounds = array<i64: 4, 28>}, {pipeline_mode = #tpu.pipeline_mode<synchronous>, transform_indices = @transform_3, window_bounds = array<i64: 4, 1>}, {pipeline_mode = #tpu.pipeline_mode<synchronous>, transform_indices = @transform_4, window_bounds = array<i64: 4, 1>}, {transform_indices = @transform_5, window_bounds = array<i64: 1, 4, 256>}]} {
    %c0 = arith.constant 0 : index
    %c0_0 = arith.constant 0 : index
    %c0_1 = arith.constant 0 : index
    %0 = vector.load %arg2[%c0, %c0_0, %c0_1] : memref<1x4x256xf32, #tpu.memory_space<vmem>>, vector<1x4x256xf32>
    %1 = vector.shape_cast %0 : vector<1x4x256xf32> to vector<4x256xf32>
    %c-6_i32 = arith.constant -6 : i32
    %c0_i32 = arith.constant 0 : i32
    %2 = arith.maxsi %c-6_i32, %c0_i32 : i32
    %c0_2 = arith.constant 0 : index
    %c0_3 = arith.constant 0 : index
    %3 = arith.index_cast %2 : i32 to index
    %4 = vector.load %arg2[%c0_2, %c0_3, %3] : memref<1x4x256xf32, #tpu.memory_space<vmem>>, vector<1x4x6xf32>
    %5 = vector.shape_cast %4 : vector<1x4x6xf32> to vector<4x6xf32>
    %c256_i32 = arith.constant 256 : i32
    %c250_i32 = arith.constant 250 : i32
    %6 = arith.minsi %c256_i32, %c250_i32 : i32
    %c0_4 = arith.constant 0 : index
    %c0_5 = arith.constant 0 : index
    %7 = arith.index_cast %6 : i32 to index
    %8 = vector.load %arg2[%c0_4, %c0_5, %7] : memref<1x4x256xf32, #tpu.memory_space<vmem>>, vector<1x4x6xf32>
    %9 = vector.shape_cast %8 : vector<1x4x6xf32> to vector<4x6xf32>
    %c0_i32_6 = arith.constant 0 : i32
    %10 = arith.cmpi sgt, %arg1, %c0_i32_6 : i32
    %cst = arith.constant 0.000000e+00 : f32
    %11 = vector.broadcast %cst : f32 to vector<4x6xf32>
    %12 = arith.select %10, %5, %11 : vector<4x6xf32>
    %c0_i32_7 = arith.constant 0 : i32
    %13 = arith.cmpi slt, %arg1, %c0_i32_7 : i32
    %cst_8 = arith.constant 0.000000e+00 : f32
    %14 = vector.broadcast %cst_8 : f32 to vector<4x6xf32>
    %15 = arith.select %13, %9, %14 : vector<4x6xf32>
    %c0_9 = arith.constant 0 : index
    %c0_10 = arith.constant 0 : index
    %16 = vector.load %arg8[%c0_9, %c0_10] : memref<4x268xf32, #tpu.memory_space<vmem>>, vector<4x6xf32>
    tpu.vector_store %arg8[%c0_9, %c0_10], %12 {strides = array<i32>} : memref<4x268xf32, #tpu.memory_space<vmem>>, vector<4x6xf32>,
    %c0_11 = arith.constant 0 : index
    %c6 = arith.constant 6 : index
    %17 = vector.load %arg8[%c0_11, %c6] : memref<4x268xf32, #tpu.memory_space<vmem>>, vector<4x256xf32>
    tpu.vector_store %arg8[%c0_11, %c6], %1 {strides = array<i32>} : memref<4x268xf32, #tpu.memory_space<vmem>>, vector<4x256xf32>,
    %c0_12 = arith.constant 0 : index
    %c262 = arith.constant 262 : index
    %18 = vector.load %arg8[%c0_12, %c262] : memref<4x268xf32, #tpu.memory_space<vmem>>, vector<4x6xf32>
    tpu.vector_store %arg8[%c0_12, %c262], %15 {strides = array<i32>} : memref<4x268xf32, #tpu.memory_space<vmem>>, vector<4x6xf32>,
    %c0_13 = arith.constant 0 : index
    %c0_14 = arith.constant 0 : index
    %19 = vector.load %arg8[%c0_13, %c0_14] : memref<4x268xf32, #tpu.memory_space<vmem>>, vector<4x268xf32>
    %c0_15 = arith.constant 0 : index
    %c0_16 = arith.constant 0 : index
    %20 = vector.load %arg3[%c0_15, %c0_16] : memref<4x28xf32, #tpu.memory_space<vmem>>, vector<4x28xf32>
    %c0_17 = arith.constant 0 : index
    %c0_18 = arith.constant 0 : index
    %21 = vector.load %arg4[%c0_17, %c0_18] : memref<4x28xf32, #tpu.memory_space<vmem>>, vector<4x28xf32>
    %cst_19 = arith.constant 0.000000e+00 : f32
    %22 = vector.broadcast %cst_19 : f32 to vector<4x262xf32>
    %23 = vector.extract_strided_slice %20 {offsets = [0, 0], sizes = [4, 4], strides = [1, 1]} : vector<4x28xf32> to vector<4x4xf32>
    %24 = vector.extract_strided_slice %19 {offsets = [0, 0], sizes = [4, 262], strides = [1, 1]} : vector<4x268xf32> to vector<4x262xf32>
    %cst_20 = arith.constant dense<0.000000e+00> : vector<4x262xf32>
    %25 = tpu.matmul %23, %24, %cst_20 {dimension_numbers = #tpu.dot_dimension_numbers<[1], [0], [0], [1], [0, 0, 1, 1], [], []>} : vector<4x4xf32>, vector<4x262xf32>, vector<4x262xf32> -> vector<4x262xf32>
    %26 = arith.addf %22, %25 : vector<4x262xf32>
    %27 = vector.extract_strided_slice %20 {offsets = [0, 4], sizes = [4, 4], strides = [1, 1]} : vector<4x28xf32> to vector<4x4xf32>
    %28 = vector.extract_strided_slice %19 {offsets = [0, 1], sizes = [4, 262], strides = [1, 1]} : vector<4x268xf32> to vector<4x262xf32>
    %cst_21 = arith.constant dense<0.000000e+00> : vector<4x262xf32>
    %29 = tpu.matmul %27, %28, %cst_21 {dimension_numbers = #tpu.dot_dimension_numbers<[1], [0], [0], [1], [0, 0, 1, 1], [], []>} : vector<4x4xf32>, vector<4x262xf32>, vector<4x262xf32> -> vector<4x262xf32>
    %30 = arith.addf %26, %29 : vector<4x262xf32>
    %31 = vector.extract_strided_slice %20 {offsets = [0, 8], sizes = [4, 4], strides = [1, 1]} : vector<4x28xf32> to vector<4x4xf32>
    %32 = vector.extract_strided_slice %19 {offsets = [0, 2], sizes = [4, 262], strides = [1, 1]} : vector<4x268xf32> to vector<4x262xf32>
    %cst_22 = arith.constant dense<0.000000e+00> : vector<4x262xf32>
    %33 = tpu.matmul %31, %32, %cst_22 {dimension_numbers = #tpu.dot_dimension_numbers<[1], [0], [0], [1], [0, 0, 1, 1], [], []>} : vector<4x4xf32>, vector<4x262xf32>, vector<4x262xf32> -> vector<4x262xf32>
    %34 = arith.addf %30, %33 : vector<4x262xf32>
    %35 = vector.extract_strided_slice %20 {offsets = [0, 12], sizes = [4, 4], strides = [1, 1]} : vector<4x28xf32> to vector<4x4xf32>
    %36 = vector.extract_strided_slice %19 {offsets = [0, 3], sizes = [4, 262], strides = [1, 1]} : vector<4x268xf32> to vector<4x262xf32>
    %cst_23 = arith.constant dense<0.000000e+00> : vector<4x262xf32>
    %37 = tpu.matmul %35, %36, %cst_23 {dimension_numbers = #tpu.dot_dimension_numbers<[1], [0], [0], [1], [0, 0, 1, 1], [], []>} : vector<4x4xf32>, vector<4x262xf32>, vector<4x262xf32> -> vector<4x262xf32>
    %38 = arith.addf %34, %37 : vector<4x262xf32>
    %39 = vector.extract_strided_slice %20 {offsets = [0, 16], sizes = [4, 4], strides = [1, 1]} : vector<4x28xf32> to vector<4x4xf32>
    %40 = vector.extract_strided_slice %19 {offsets = [0, 4], sizes = [4, 262], strides = [1, 1]} : vector<4x268xf32> to vector<4x262xf32>
    %cst_24 = arith.constant dense<0.000000e+00> : vector<4x262xf32>
    %41 = tpu.matmul %39, %40, %cst_24 {dimension_numbers = #tpu.dot_dimension_numbers<[1], [0], [0], [1], [0, 0, 1, 1], [], []>} : vector<4x4xf32>, vector<4x262xf32>, vector<4x262xf32> -> vector<4x262xf32>
    %42 = arith.addf %38, %41 : vector<4x262xf32>
    %43 = vector.extract_strided_slice %20 {offsets = [0, 20], sizes = [4, 4], strides = [1, 1]} : vector<4x28xf32> to vector<4x4xf32>
    %44 = vector.extract_strided_slice %19 {offsets = [0, 5], sizes = [4, 262], strides = [1, 1]} : vector<4x268xf32> to vector<4x262xf32>
    %cst_25 = arith.constant dense<0.000000e+00> : vector<4x262xf32>
    %45 = tpu.matmul %43, %44, %cst_25 {dimension_numbers = #tpu.dot_dimension_numbers<[1], [0], [0], [1], [0, 0, 1, 1], [], []>} : vector<4x4xf32>, vector<4x262xf32>, vector<4x262xf32> -> vector<4x262xf32>
    %46 = arith.addf %42, %45 : vector<4x262xf32>
    %47 = vector.extract_strided_slice %20 {offsets = [0, 24], sizes = [4, 4], strides = [1, 1]} : vector<4x28xf32> to vector<4x4xf32>
    %48 = vector.extract_strided_slice %19 {offsets = [0, 6], sizes = [4, 262], strides = [1, 1]} : vector<4x268xf32> to vector<4x262xf32>
    %cst_26 = arith.constant dense<0.000000e+00> : vector<4x262xf32>
    %49 = tpu.matmul %47, %48, %cst_26 {dimension_numbers = #tpu.dot_dimension_numbers<[1], [0], [0], [1], [0, 0, 1, 1], [], []>} : vector<4x4xf32>, vector<4x262xf32>, vector<4x262xf32> -> vector<4x262xf32>
    %50 = arith.addf %46, %49 : vector<4x262xf32>
    %c0_27 = arith.constant 0 : index
    %c0_28 = arith.constant 0 : index
    %51 = vector.load %arg5[%c0_27, %c0_28] : memref<4x1xf32, #tpu.memory_space<vmem>>, vector<4x1xf32>
    %52 = vector.broadcast %51 : vector<4x1xf32> to vector<4x262xf32>
    %53 = arith.addf %50, %52 : vector<4x262xf32>
    %cst_29 = arith.constant 0.000000e+00 : f32
    %54 = vector.broadcast %cst_29 : f32 to vector<4x262xf32>
    %55 = arith.maximumf %53, %54 : vector<4x262xf32>
    %56 = tpu.iota {dimensions = array<i32: 1>} : vector<1x262xi32>
    %c-3_i32 = arith.constant -3 : i32
    %57 = vector.broadcast %c-3_i32 : i32 to vector<1x262xi32>
    %58 = arith.addi %57, %56 : vector<1x262xi32>
    %c0_i32_30 = arith.constant 0 : i32
    %59 = vector.broadcast %c0_i32_30 : i32 to vector<1x262xi32>
    %60 = arith.cmpi sge, %58, %59 : vector<1x262xi32>
    %c256_i32_31 = arith.constant 256 : i32
    %61 = vector.broadcast %c256_i32_31 : i32 to vector<1x262xi32>
    %62 = arith.cmpi slt, %58, %61 : vector<1x262xi32>
    %63 = arith.andi %60, %62 : vector<1x262xi1>
    %cst_32 = arith.constant 0.000000e+00 : f32
    %64 = vector.shape_cast %63 : vector<1x262xi1> to vector<1x262xi1>
    %65 = vector.broadcast %64 : vector<1x262xi1> to vector<4x262xi1>
    %66 = vector.broadcast %cst_32 : f32 to vector<4x262xf32>
    %67 = arith.select %65, %55, %66 : vector<4x262xi1>, vector<4x262xf32>
    %cst_33 = arith.constant 0.000000e+00 : f32
    %68 = vector.broadcast %cst_33 : f32 to vector<4x256xf32>
    %69 = vector.extract_strided_slice %21 {offsets = [0, 0], sizes = [4, 4], strides = [1, 1]} : vector<4x28xf32> to vector<4x4xf32>
    %70 = vector.extract_strided_slice %67 {offsets = [0, 0], sizes = [4, 256], strides = [1, 1]} : vector<4x262xf32> to vector<4x256xf32>
    %cst_34 = arith.constant dense<0.000000e+00> : vector<4x256xf32>
    %71 = tpu.matmul %69, %70, %cst_34 {dimension_numbers = #tpu.dot_dimension_numbers<[1], [0], [0], [1], [0, 0, 1, 1], [], []>} : vector<4x4xf32>, vector<4x256xf32>, vector<4x256xf32> -> vector<4x256xf32>
    %72 = arith.addf %68, %71 : vector<4x256xf32>
    %73 = vector.extract_strided_slice %21 {offsets = [0, 4], sizes = [4, 4], strides = [1, 1]} : vector<4x28xf32> to vector<4x4xf32>
    %74 = vector.extract_strided_slice %67 {offsets = [0, 1], sizes = [4, 256], strides = [1, 1]} : vector<4x262xf32> to vector<4x256xf32>
    %cst_35 = arith.constant dense<0.000000e+00> : vector<4x256xf32>
    %75 = tpu.matmul %73, %74, %cst_35 {dimension_numbers = #tpu.dot_dimension_numbers<[1], [0], [0], [1], [0, 0, 1, 1], [], []>} : vector<4x4xf32>, vector<4x256xf32>, vector<4x256xf32> -> vector<4x256xf32>
    %76 = arith.addf %72, %75 : vector<4x256xf32>
    %77 = vector.extract_strided_slice %21 {offsets = [0, 8], sizes = [4, 4], strides = [1, 1]} : vector<4x28xf32> to vector<4x4xf32>
    %78 = vector.extract_strided_slice %67 {offsets = [0, 2], sizes = [4, 256], strides = [1, 1]} : vector<4x262xf32> to vector<4x256xf32>
    %cst_36 = arith.constant dense<0.000000e+00> : vector<4x256xf32>
    %79 = tpu.matmul %77, %78, %cst_36 {dimension_numbers = #tpu.dot_dimension_numbers<[1], [0], [0], [1], [0, 0, 1, 1], [], []>} : vector<4x4xf32>, vector<4x256xf32>, vector<4x256xf32> -> vector<4x256xf32>
    %80 = arith.addf %76, %79 : vector<4x256xf32>
    %81 = vector.extract_strided_slice %21 {offsets = [0, 12], sizes = [4, 4], strides = [1, 1]} : vector<4x28xf32> to vector<4x4xf32>
    %82 = vector.extract_strided_slice %67 {offsets = [0, 3], sizes = [4, 256], strides = [1, 1]} : vector<4x262xf32> to vector<4x256xf32>
    %cst_37 = arith.constant dense<0.000000e+00> : vector<4x256xf32>
    %83 = tpu.matmul %81, %82, %cst_37 {dimension_numbers = #tpu.dot_dimension_numbers<[1], [0], [0], [1], [0, 0, 1, 1], [], []>} : vector<4x4xf32>, vector<4x256xf32>, vector<4x256xf32> -> vector<4x256xf32>
    %84 = arith.addf %80, %83 : vector<4x256xf32>
    %85 = vector.extract_strided_slice %21 {offsets = [0, 16], sizes = [4, 4], strides = [1, 1]} : vector<4x28xf32> to vector<4x4xf32>
    %86 = vector.extract_strided_slice %67 {offsets = [0, 4], sizes = [4, 256], strides = [1, 1]} : vector<4x262xf32> to vector<4x256xf32>
    %cst_38 = arith.constant dense<0.000000e+00> : vector<4x256xf32>
    %87 = tpu.matmul %85, %86, %cst_38 {dimension_numbers = #tpu.dot_dimension_numbers<[1], [0], [0], [1], [0, 0, 1, 1], [], []>} : vector<4x4xf32>, vector<4x256xf32>, vector<4x256xf32> -> vector<4x256xf32>
    %88 = arith.addf %84, %87 : vector<4x256xf32>
    %89 = vector.extract_strided_slice %21 {offsets = [0, 20], sizes = [4, 4], strides = [1, 1]} : vector<4x28xf32> to vector<4x4xf32>
    %90 = vector.extract_strided_slice %67 {offsets = [0, 5], sizes = [4, 256], strides = [1, 1]} : vector<4x262xf32> to vector<4x256xf32>
    %cst_39 = arith.constant dense<0.000000e+00> : vector<4x256xf32>
    %91 = tpu.matmul %89, %90, %cst_39 {dimension_numbers = #tpu.dot_dimension_numbers<[1], [0], [0], [1], [0, 0, 1, 1], [], []>} : vector<4x4xf32>, vector<4x256xf32>, vector<4x256xf32> -> vector<4x256xf32>
    %92 = arith.addf %88, %91 : vector<4x256xf32>
    %93 = vector.extract_strided_slice %21 {offsets = [0, 24], sizes = [4, 4], strides = [1, 1]} : vector<4x28xf32> to vector<4x4xf32>
    %94 = vector.extract_strided_slice %67 {offsets = [0, 6], sizes = [4, 256], strides = [1, 1]} : vector<4x262xf32> to vector<4x256xf32>
    %cst_40 = arith.constant dense<0.000000e+00> : vector<4x256xf32>
    %95 = tpu.matmul %93, %94, %cst_40 {dimension_numbers = #tpu.dot_dimension_numbers<[1], [0], [0], [1], [0, 0, 1, 1], [], []>} : vector<4x4xf32>, vector<4x256xf32>, vector<4x256xf32> -> vector<4x256xf32>
    %96 = arith.addf %92, %95 : vector<4x256xf32>
    %c0_41 = arith.constant 0 : index
    %c0_42 = arith.constant 0 : index
    %97 = vector.load %arg6[%c0_41, %c0_42] : memref<4x1xf32, #tpu.memory_space<vmem>>, vector<4x1xf32>
    %98 = vector.broadcast %97 : vector<4x1xf32> to vector<4x256xf32>
    %99 = arith.addf %96, %98 : vector<4x256xf32>
    %100 = arith.addf %99, %1 : vector<4x256xf32>
    %cst_43 = arith.constant 0.000000e+00 : f32
    %101 = vector.broadcast %cst_43 : f32 to vector<4x256xf32>
    %102 = arith.maximumf %100, %101 : vector<4x256xf32>
    %103 = arith.truncf %102 : vector<4x256xf32> to vector<4x256xbf16>
    %c0_44 = arith.constant 0 : index
    %c0_45 = arith.constant 0 : index
    %c0_46 = arith.constant 0 : index
    %104 = vector.load %arg7[%c0_44, %c0_45, %c0_46] : memref<1x4x256xbf16, #tpu.memory_space<vmem>>, vector<1x4x256xbf16>
    %105 = vector.shape_cast %104 : vector<1x4x256xbf16> to vector<4x256xbf16>
    %106 = vector.shape_cast %103 : vector<4x256xbf16> to vector<1x4x256xbf16>
    tpu.vector_store %arg7[%c0_44, %c0_45, %c0_46], %106 {strides = array<i32>} : memref<1x4x256xbf16, #tpu.memory_space<vmem>>, vector<1x4x256xbf16>,
    return
  }
  func.func @transform_0(%arg0: i32, %arg1: i32) -> (i32, i32, i32) {
    %c0_i32 = arith.constant 0 : i32
    %c0_i32_0 = arith.constant 0 : i32
    %c0_i32_1 = arith.constant 0 : i32
    return %arg0, %c0_i32, %c0_i32_0 : i32, i32, i32
  }
  func.func @transform_1(%arg0: i32, %arg1: i32) -> (i32, i32) {
    %c0_i32 = arith.constant 0 : i32
    %c0_i32_0 = arith.constant 0 : i32
    %c0_i32_1 = arith.constant 0 : i32
    return %c0_i32, %c0_i32_0 : i32, i32
  }
  func.func @transform_2(%arg0: i32, %arg1: i32) -> (i32, i32) {
    %c0_i32 = arith.constant 0 : i32
    %c0_i32_0 = arith.constant 0 : i32
    %c0_i32_1 = arith.constant 0 : i32
    return %c0_i32, %c0_i32_0 : i32, i32
  }
  func.func @transform_3(%arg0: i32, %arg1: i32) -> (i32, i32) {
    %c0_i32 = arith.constant 0 : i32
    %c0_i32_0 = arith.constant 0 : i32
    %c0_i32_1 = arith.constant 0 : i32
    return %c0_i32, %c0_i32_0 : i32, i32
  }
  func.func @transform_4(%arg0: i32, %arg1: i32) -> (i32, i32) {
    %c0_i32 = arith.constant 0 : i32
    %c0_i32_0 = arith.constant 0 : i32
    %c0_i32_1 = arith.constant 0 : i32
    return %c0_i32, %c0_i32_0 : i32, i32
  }
  func.func @transform_5(%arg0: i32, %arg1: i32) -> (i32, i32, i32) {
    %c0_i32 = arith.constant 0 : i32
    %c0_i32_0 = arith.constant 0 : i32
    return %arg0, %c0_i32, %arg1 : i32, i32, i32
  }
}

</mosaic_0001>

<llo_original>
// kernel: tpu_custom_call.1
$region0: #{tpu_custom_call.1}
  #allocation0 [shape = 'u32[]', space=smem, size = 0x4, offset = 0x4, fixed_abs, tag = 'smem constant byte address 0x4 - core index']
  #allocation1 [shape = 'u32[144,128]{1,0:T(1,128)}', space=vmem, size = 0x12000, scoped, tag = 'internal scratch']
  #allocation2 [shape = 'f32[4,268]{1,0:T(4,128)}', space=vmem, size = 0x1800, scoped, tag = 'scratch operand']
  %s0 = inlined_call_operand.hbm [shape: f32[2,4,256], index: 0, kind: input, shape index: {}]
  %s1 = inlined_call_operand.vmem [shape: f32[4,28], index: 1, kind: input, shape index: {}]
  %s2 = inlined_call_operand.vmem [shape: f32[4,28], index: 2, kind: input, shape index: {}]
  %s3 = inlined_call_operand.vmem [shape: f32[4,1], index: 3, kind: input, shape index: {}]
  %s4 = inlined_call_operand.vmem [shape: f32[4,1], index: 4, kind: input, shape index: {}]
  %s5 = inlined_call_operand.hbm [shape: bf16[2,4,256], index: 5, kind: output, shape index: {}]
  %s6 = sld [smem:[#allocation0]]
  $region57: #{tpu_custom_call.1} parent=0
    _
  %s8 = ssub.s32 1, %s6
  %s9 = scalar_select 0, %s8, %s6
  $region1: #{tpu_custom_call.1} parent=0
    #allocation3 [shape = 'u8[8192]{0}', space=vmem, size = 0x2000, scoped, tag = 'input window, operand 0']
    #allocation4 [shape = 's32[2]{0}', space=sflag, size = 0x8, scoped, tag = 'scoped memory for tpu_custom_call.1']
    #allocation5 [shape = 's32[2]{0}', space=sflag, size = 0x8, scoped, tag = 'scoped memory for tpu_custom_call.1']
    #allocation6 [shape = 'u8[4096]{0}', space=vmem, size = 0x1000, scoped, tag = 'output window, operand 0']
    %10 = vsyncpa [#allocation4], 0
    %s11 = scalar_lea.sflag [#allocation4], 1
    %12 = vsyncpa %s11, 0
    %13 = vsyncpa [#allocation5], 0
    %s14 = scalar_lea.sflag [#allocation5], 1
    %15 = vsyncpa %s14, 0
    loop: start=0, step=1, limit=4
    $region2: #{tpu_custom_call.1} parent=1 // loop_pre_header
      _
    $region3: #{tpu_custom_call.1} parent=1 // loop_header
      %s17 = sphi 0, %s21
      %p18 = scmp.ge.s32.totalorder %s17, 4
      %s24 = sphi 0, %s36
      %s25 = sphi 0, %s32
      %s26 = sphi 0, %s24
      %s27 = sphi 0, %s25
      %s28 = sphi 0, %s26
      %s29 = sphi 0, %s27
      %s39 = sphi 0, %s41
      %s42 = sphi 0, %s39
      %s43 = sphi 0, %s42
      %s59 = sphi 0, %s43
      %s63 = sphi 0, %s63
      %s65 = sphi 0, %s63
      %s66 = sphi 0, %s65
      %s80 = sphi 0, %s66
      %s84 = sphi 0, %s84
      %s86 = sphi 0, %s84
      %s87 = sphi 0, %s86
      %s101 = sphi 0, %s87
      %s105 = sphi 0, %s105
      %s107 = sphi 0, %s105
      %s108 = sphi 0, %s107
      %s122 = sphi 0, %s108
      %s126 = sphi 0, %s126
      %s128 = sphi 0, %s126
      %s129 = sphi 0, %s128
      %s143 = sphi 0, %s129
      %s151 = sphi 0, %s153
      %s154 = sphi 0, %s151
      %s155 = sphi 0, %s154
      %s171 = sphi 0, %s155
    $region4: #{tpu_custom_call.1} parent=1 // loop_header_branch
      %20 = sbr.rel (%p18) target = $region8
    $region5: #{tpu_custom_call.1} parent=1 // loop_body
      %s22 = ssub.s32 %s17, 1
      %s23 = ssub.s32 %s17, 2
      %s30 = sadd.s32 1, %s25
      %p31 = scmp.ge.s32.totalorder %s30, 1
      %s32 = scalar_select %p31, 0, %s30
      %s33 = sadd.s32 1, %s24
      %s34 = scalar_select %p31, %s33, %s24
      %p35 = scmp.ge.s32.totalorder %s34, 2
      %s36 = scalar_select %p35, 0, %s34
      %s37 = ssub.s32 %s24, %s36
      %p38 = scmp.eq.s32.totalorder %s37, 0
      %s40 = sadd.s32 %s39, 1
      %s41 = scalar_select %p38, %s39, %s40
      %p44 = pneg %p38
      %p45 = scmp.eq.s32.totalorder %s17, 1
      %p46 = por %p44, %p45
      %p47 = scmp.ne.s32.totalorder %s39, %s42
      %p48 = scmp.eq.s32.totalorder %s17, 0
      %p49 = por %p47, %p48
      %p50 = scmp.ne.s32.totalorder %s39, %s42
      %p51 = scmp.eq.s32.totalorder %s22, 1
      %p52 = por %p50, %p51
      %p53 = scmp.ne.s32.totalorder %s42, %s43
      %p54 = scmp.eq.s32.totalorder %s22, 0
      %p55 = por %p53, %p54
      %p56 = scmp.ne.s32.totalorder %s42, %s43
      %p57 = scmp.eq.s32.totalorder %s23, 1
      %p58 = por %p56, %p57
      %p60 = scmp.ne.s32.totalorder %s43, %s59
      %p61 = scmp.eq.s32.totalorder %s23, 0
      %p62 = por %p60, %p61
      %s64 = sadd.s32 %s63, 1
      %p67 = scmp.eq.s32.totalorder %s17, 1
      %p68 = scmp.ne.s32.totalorder %s63, %s65
      %p69 = scmp.eq.s32.totalorder %s17, 0
      %p70 = por %p68, %p69
      %p71 = scmp.ne.s32.totalorder %s63, %s65
      %p72 = scmp.eq.s32.totalorder %s22, 1
      %p73 = por %p71, %p72
      %p74 = scmp.ne.s32.totalorder %s65, %s66
      %p75 = scmp.eq.s32.totalorder %s22, 0
      %p76 = por %p74, %p75
      %p77 = scmp.ne.s32.totalorder %s65, %s66
      %p78 = scmp.eq.s32.totalorder %s23, 1
      %p79 = por %p77, %p78
      %p81 = scmp.ne.s32.totalorder %s66, %s80
      %p82 = scmp.eq.s32.totalorder %s23, 0
      %p83 = por %p81, %p82
      %s85 = sadd.s32 %s84, 1
      %p88 = scmp.eq.s32.totalorder %s17, 1
      %p89 = scmp.ne.s32.totalorder %s84, %s86
      %p90 = scmp.eq.s32.totalorder %s17, 0
      %p91 = por %p89, %p90
      %p92 = scmp.ne.s32.totalorder %s84, %s86
      %p93 = scmp.eq.s32.totalorder %s22, 1
      %p94 = por %p92, %p93
      %p95 = scmp.ne.s32.totalorder %s86, %s87
      %p96 = scmp.eq.s32.totalorder %s22, 0
      %p97 = por %p95, %p96
      %p98 = scmp.ne.s32.totalorder %s86, %s87
      %p99 = scmp.eq.s32.totalorder %s23, 1
      %p100 = por %p98, %p99
      %p102 = scmp.ne.s32.totalorder %s87, %s101
      %p103 = scmp.eq.s32.totalorder %s23, 0
      %p104 = por %p102, %p103
      %s106 = sadd.s32 %s105, 1
      %p109 = scmp.eq.s32.totalorder %s17, 1
      %p110 = scmp.ne.s32.totalorder %s105, %s107
      %p111 = scmp.eq.s32.totalorder %s17, 0
      %p112 = por %p110, %p111
      %p113 = scmp.ne.s32.totalorder %s105, %s107
      %p114 = scmp.eq.s32.totalorder %s22, 1
      %p115 = por %p113, %p114
      %p116 = scmp.ne.s32.totalorder %s107, %s108
      %p117 = scmp.eq.s32.totalorder %s22, 0
      %p118 = por %p116, %p117
      %p119 = scmp.ne.s32.totalorder %s107, %s108
      %p120 = scmp.eq.s32.totalorder %s23, 1
      %p121 = por %p119, %p120
      %p123 = scmp.ne.s32.totalorder %s108, %s122
      %p124 = scmp.eq.s32.totalorder %s23, 0
      %p125 = por %p123, %p124
      %s127 = sadd.s32 %s126, 1
      %p130 = scmp.eq.s32.totalorder %s17, 1
      %p131 = scmp.ne.s32.totalorder %s126, %s128
      %p132 = scmp.eq.s32.totalorder %s17, 0
      %p133 = por %p131, %p132
      %p134 = scmp.ne.s32.totalorder %s126, %s128
      %p135 = scmp.eq.s32.totalorder %s22, 1
      %p136 = por %p134, %p135
      %p137 = scmp.ne.s32.totalorder %s128, %s129
      %p138 = scmp.eq.s32.totalorder %s22, 0
      %p139 = por %p137, %p138
      %p140 = scmp.ne.s32.totalorder %s128, %s129
      %p141 = scmp.eq.s32.totalorder %s23, 1
      %p142 = por %p140, %p141
      %p144 = scmp.ne.s32.totalorder %s129, %s143
      %p145 = scmp.eq.s32.totalorder %s23, 0
      %p146 = por %p144, %p145
      %s147 = ssub.s32 %s24, %s36
      %s148 = ssub.s32 %s25, %s32
      %s149 = sor.u32 %s147, %s148
      %p150 = scmp.eq.s32.totalorder %s149, 0
      %s152 = sadd.s32 %s151, 1
      %s153 = scalar_select %p150, %s151, %s152
      %p156 = pneg %p150
      %p157 = scmp.eq.s32.totalorder %s17, 1
      %p158 = por %p156, %p157
      %p159 = scmp.ne.s32.totalorder %s151, %s154
      %p160 = scmp.eq.s32.totalorder %s17, 0
      %p161 = por %p159, %p160
      %p162 = scmp.ne.s32.totalorder %s151, %s154
      %p163 = scmp.eq.s32.totalorder %s22, 1
      %p164 = por %p162, %p163
      %p165 = scmp.ne.s32.totalorder %s154, %s155
      %p166 = scmp.eq.s32.totalorder %s22, 0
      %p167 = por %p165, %p166
      %p168 = scmp.ne.s32.totalorder %s154, %s155
      %p169 = scmp.eq.s32.totalorder %s23, 1
      %p170 = por %p168, %p169
      %p172 = scmp.ne.s32.totalorder %s155, %s171
      %p173 = scmp.eq.s32.totalorder %s23, 0
      %p174 = por %p172, %p173
      %p175 = scmp.le.s32.totalorder 1, %s17
      %p176 = scmp.lt.s32.totalorder %s17, 3
      %p177 = pnand %p175, %p176
      %p178 = pneg %p177
      // Predicated region
      $region9: #{tpu_custom_call.1} parent=5 // pred_check
        _
      $region10: #{tpu_custom_call.1} parent=5 // pred_check_branch
        %180 = sbr.rel (%p177) target = $region12
      $region11: #{tpu_custom_call.1} parent=5 // pred_region
        %s181 = ssub.s32 %s17, 1
        // Predicated region
        $region13: #{tpu_custom_call.1} parent=11 // pred_check
          %p182 = pneg %p76
        $region14: #{tpu_custom_call.1} parent=11 // pred_check_branch
          %184 = sbr.rel (%p182) target = $region16
        $region15: #{tpu_custom_call.1} parent=11 // pred_region
          _
        $region16: #{tpu_custom_call.1} parent=11 // pred_fallthru
          _
        // Predicated region
        $region17: #{tpu_custom_call.1} parent=11 // pred_check
          %p185 = pneg %p97
        $region18: #{tpu_custom_call.1} parent=11 // pred_check_branch
          %187 = sbr.rel (%p185) target = $region20
        $region19: #{tpu_custom_call.1} parent=11 // pred_region
          _
        $region20: #{tpu_custom_call.1} parent=11 // pred_fallthru
          _
        // Predicated region
        $region21: #{tpu_custom_call.1} parent=11 // pred_check
          %p188 = pneg %p118
        $region22: #{tpu_custom_call.1} parent=11 // pred_check_branch
          %190 = sbr.rel (%p188) target = $region24
        $region23: #{tpu_custom_call.1} parent=11 // pred_region
          _
        $region24: #{tpu_custom_call.1} parent=11 // pred_fallthru
          _
        // Predicated region
        $region25: #{tpu_custom_call.1} parent=11 // pred_check
          %p191 = pneg %p139
        $region26: #{tpu_custom_call.1} parent=11 // pred_check_branch
          %193 = sbr.rel (%p191) target = $region28
        $region27: #{tpu_custom_call.1} parent=11 // pred_region
          _
        $region28: #{tpu_custom_call.1} parent=11 // pred_fallthru
          _
      $region12: #{tpu_custom_call.1} parent=5 // pred_fallthru
        _
      %p194 = scmp.lt.s32.totalorder %s17, 2
      // Predicated region
      $region29: #{tpu_custom_call.1} parent=5 // pred_check
        %p195 = pneg %p194
      $region30: #{tpu_custom_call.1} parent=5 // pred_check_branch
        %197 = sbr.rel (%p195) target = $region32
      $region31: #{tpu_custom_call.1} parent=5 // pred_region
        // Predicated region
        $region33: #{tpu_custom_call.1} parent=31 // pred_check
          %p198 = pneg %p49
        $region34: #{tpu_custom_call.1} parent=31 // pred_check_branch
          %200 = sbr.rel (%p198) target = $region36
        $region35: #{tpu_custom_call.1} parent=31 // pred_region
          %s201 = sand.u32 %s39, 1
          %s202 = scalar_lea.sflag [#allocation4], %s201
          %s203 = sand.u32 %s39, 1
          %s204 = smul.addr %s203, 8
          %s205 = scalar_lea.vmem [#allocation3], %s204
          %s207 = ssub.s32 128, 128
          %208 = vsyncadd %s202, %s207
          %s209 = smul.addr %s24, 2
          %s210 = smul.addr %s209, 64
          %s211 = scalar_lea.hbm %s0, %s210
          %s213 = sshll.u32 %s205, 4
          %s214 = int_to_ptr.vmem [resolvable:$true] %s213
          %216 = dma.hbm_to_vmem [thread:$0]  %s211, 128, %s214, %s202
        $region36: #{tpu_custom_call.1} parent=31 // pred_fallthru
          _
      $region32: #{tpu_custom_call.1} parent=5 // pred_fallthru
        _
      %p217 = scmp.le.s32.totalorder 1, %s17
      %p218 = scmp.lt.s32.totalorder %s17, 3
      %p219 = pnand %p217, %p218
      %p220 = pneg %p219
      // Predicated region
      $region37: #{tpu_custom_call.1} parent=5 // pred_check
        _
      $region38: #{tpu_custom_call.1} parent=5 // pred_check_branch
        %222 = sbr.rel (%p219) target = $region40
      $region39: #{tpu_custom_call.1} parent=5 // pred_region
        %s223 = ssub.s32 %s17, 1
        %s224 = sand.u32 %s42, 1
        %s225 = scalar_lea.sflag [#allocation4], %s224
        %s226 = sand.u32 %s42, 1
        %s227 = smul.addr %s226, 8
        %s228 = scalar_lea.vmem [#allocation3], %s227
        // Predicated region
        $region41: #{tpu_custom_call.1} parent=39 // pred_check
          %p229 = pneg %p55
        $region42: #{tpu_custom_call.1} parent=39 // pred_check_branch
          %231 = sbr.rel (%p229) target = $region44
        $region43: #{tpu_custom_call.1} parent=39 // pred_region
          %232 = dma.done %s225, 128
        $region44: #{tpu_custom_call.1} parent=39 // pred_fallthru
          _
        %s233 = sand.u32 %s42, 1
        %s234 = scalar_lea.sflag [#allocation4], %s233
        %s235 = sand.u32 %s42, 1
        %s236 = smul.addr %s235, 8
        %s237 = scalar_lea.vmem [#allocation3], %s236
        %p238 = pneg %p55
        %p239 = pneg %p52
        %p240 = pneg %p76
        %p241 = pneg %p73
        %p242 = pneg %p97
        %p243 = pneg %p94
        %p244 = pneg %p118
        %p245 = pneg %p115
        %p246 = pneg %p139
        %p247 = pneg %p136
        %p248 = pneg %p167
        %p249 = pneg %p164
        %s250 = sand.u32 %s154, 1
        %s251 = scalar_lea.sflag [#allocation5], %s250
        %s252 = sand.u32 %s154, 1
        %s253 = smul.addr %s252, 4
        %s254 = scalar_lea.vmem [#allocation6], %s253
        %s255 = smul.u32 2, %s27
        %v256 = vld [vmem:[%s228] sm:$0xff]
        %v257 = vld [vmem:[%s228] sm:$0xf]
        %v258 = vld [vmem:[%s228 + $0x4] sm:$0xf]
        %p259 = scmp.gt.s32.totalorder %s27, 0
        %s260 = scalar_select %p259, 1, 0
        %v261 = vstv %s260
        %vm262 = vcmp.eq.s32.totalorder %v261, 1
        %v263 = vsel %vm262, %v257, 0.0
        %p264 = scmp.lt.s32.totalorder %s27, 0
        %s265 = scalar_select %p264, 1, 0
        %v266 = vstv %s265
        %vm267 = vcmp.eq.s32.totalorder %v266, 1
        %v268 = vsel %vm267, %v258, 0.0
        %vm269 = vcmask 44032
        %270 = vst.msk [vmem:[#allocation2] sm:$0xf] %vm269, %v263
        %272 = vrot.lane.b32.xlu0 %v256, 6
        %v273 = vpop.permute.xlu0 %272
        %v274 = vrot.slane %v273, 4
        %vm275 = vcmask 48128
        %v276 = vsel %vm275, %v274, %v273
        %vm279 = vcmask 1043504
        %vm280 = vcmask 1047556
        %vm281 = vmor %vm280, %vm279
        %282 = vst.msk [vmem:[#allocation2] sm:$0xff] %vm281, %v276
        %283 = vst.msk [vmem:[#allocation2 + $0x8] sm:$0xf] %vm269, %v274
        %285 = vrot.lane.b32.xlu0 %v268, 12
        %v286 = vpop.permute.xlu0 %285
        %vm288 = vcmask 93232
        %289 = vst.msk [vmem:[#allocation2 + $0x8] sm:$0xf] %vm288, %v286
        %v290 = vld [vmem:[#allocation2] sm:$0xff]
        %v291 = vld [vmem:[#allocation2 + $0x8] sm:$0xf]
        %v292 = vld [vmem:[%s1] sm:$0xf]
        %v293 = vld [vmem:[%s2] sm:$0xf]
        %295 = vrot.lane.b32.xlu0 %v292, 124
        %v296 = vpop.permute.xlu0 %295
        %v299 = vcombine.high %v290, %v290
        %300 = vrot.lane.b32.xlu0 %v290, 127
        %v301 = vpop.permute.xlu0 %300
        %302 = vrot.lane.b32.xlu0 %v299, 127
        %v303 = vpop.permute.xlu0 %302
        %304 = vrot.lane.b32.xlu0 %v291, 127
        %v305 = vpop.permute.xlu0 %304
        %vm306 = vcmask 1039360
        %v307 = vsel %vm306, %v301, %v303
        %v308 = vsel %vm306, %v303, %v305
        %vm309 = vcmask 31744
        %v310 = vsel %vm309, %v296, 0
        %vm312 = vcmask 1043456
        %v313 = vsel %vm312, %v307, 0
        %v315 = vsel %vm312, %v308, 0
        %v317 = vsel %vm312, %v305, 0
        %319 = vmatprep.subr.mxu0 %v315
        %320 = vmatpush1.msra.mxu0 %v313
        %321 = vmatprep.subr.mxu0 0.0
        %322 = vmatpush1.msra.mxu0 0.0
        %323 = vmatprep.subr.mxu0 0.0
        %324 = vmatpush1.msra.mxu0 0.0
        %325 = vmatprep.subr.mxu0 0.0
        %326 = vmatpush1.msra.mxu0 0.0
        %327 = vmatprep.subr.mxu0 0.0
        %328 = vmatpush1.msra.mxu0 0.0
        %329 = vmatprep.subr.mxu0 0.0
        %330 = vmatpush1.msra.mxu0 0.0
        %331 = vmatprep.subr.mxu0 0.0
        %332 = vmatpush1.msra.mxu0 0.0
        %333 = vmatprep.subr.mxu0 0.0
        %334 = vmatpush1.msra.mxu0 0.0
        %335 = vmatprep.subr.mxu0 0.0
        %336 = vmatpush1.msra.mxu0 0.0
        %337 = vmatprep.subr.mxu0 0.0
        %338 = vmatpush1.msra.mxu0 0.0
        %339 = vmatprep.subr.mxu0 0.0
        %340 = vmatpush1.msra.mxu0 0.0
        %341 = vmatprep.subr.mxu0 0.0
        %342 = vmatpush1.msra.mxu0 0.0
        %343 = vmatprep.subr.mxu0 0.0
        %344 = vmatpush1.msra.mxu0 0.0
        %345 = vmatprep.subr.mxu0 0.0
        %346 = vmatpush1.msra.mxu0 0.0
        %347 = vmatprep.subr.mxu0 0.0
        %348 = vmatpush1.msra.mxu0 0.0
        %349 = vmatprep.subr.mxu0 0.0
        %350 = vmatpush1.msra.mxu0 0.0
        %351 = vmatprep.subr.mxu0 0.0
        %352 = vmatpush1.msra.mxu0 0.0
        %353 = vmatprep.subr.mxu0 0.0
        %354 = vmatpush1.msra.mxu0 0.0
        %355 = vmatprep.subr.mxu0 0.0
        %356 = vmatpush1.msra.mxu0 0.0
        %357 = vmatprep.subr.mxu0 0.0
        %358 = vmatpush1.msra.mxu0 0.0
        %359 = vmatprep.subr.mxu0 0.0
        %360 = vmatpush1.msra.mxu0 0.0
        %361 = vmatprep.subr.mxu0 0.0
        %362 = vmatpush1.msra.mxu0 0.0
        %363 = vmatprep.subr.mxu0 0.0
        %364 = vmatpush1.msra.mxu0 0.0
        %365 = vmatprep.subr.mxu0 0.0
        %366 = vmatpush1.msra.mxu0 0.0
        %367 = vmatprep.subr.mxu0 0.0
        %368 = vmatpush1.msra.mxu0 0.0
        %369 = vmatprep.subr.mxu0 0.0
        %370 = vmatpush1.msra.mxu0 0.0
        %371 = vmatprep.subr.mxu0 0.0
        %372 = vmatpush1.msra.mxu0 0.0
        %373 = vmatprep.subr.mxu0 0.0
        %374 = vmatpush1.msra.mxu0 0.0
        %375 = vmatprep.subr.mxu0 0.0
        %376 = vmatpush1.msra.mxu0 0.0
        %377 = vmatprep.subr.mxu0 0.0
        %378 = vmatpush1.msra.mxu0 0.0
        %379 = vmatprep.subr.mxu0 0.0
        %380 = vmatpush1.msra.mxu0 0.0
        %381 = vmatprep.subr.mxu0 0.0
        %382 = vmatpush1.msra.mxu0 0.0
        %383 = vmatprep.mubr.f32.mxu0 0.0
        %384 = vmatmul.mubr.f32.gmra.mrb[0].mxu0 %v310
        %v385 = vpop.f32.mrb[0].mxu0
        %v386 = vadd.f32 0.0, %v385
        %v387 = vpop.f32.mrb[0].mxu0
        %v388 = vadd.f32 0.0, %v387
        %389 = vdwg.mxu0
        %390 = vmatprep.subr.mxu0 0.0
        %391 = vmatpush1.msra.mxu0 %v317
        %392 = vmatprep.subr.mxu0 0.0
        %393 = vmatpush1.msra.mxu0 0.0
        %394 = vmatprep.subr.mxu0 0.0
        %395 = vmatpush1.msra.mxu0 0.0
        %396 = vmatprep.subr.mxu0 0.0
        %397 = vmatpush1.msra.mxu0 0.0
        %398 = vmatprep.subr.mxu0 0.0
        %399 = vmatpush1.msra.mxu0 0.0
        %400 = vmatprep.subr.mxu0 0.0
        %401 = vmatpush1.msra.mxu0 0.0
        %402 = vmatprep.subr.mxu0 0.0
        %403 = vmatpush1.msra.mxu0 0.0
        %404 = vmatprep.subr.mxu0 0.0
        %405 = vmatpush1.msra.mxu0 0.0
        %406 = vmatprep.subr.mxu0 0.0
        %407 = vmatpush1.msra.mxu0 0.0
        %408 = vmatprep.subr.mxu0 0.0
        %409 = vmatpush1.msra.mxu0 0.0
        %410 = vmatprep.subr.mxu0 0.0
        %411 = vmatpush1.msra.mxu0 0.0
        %412 = vmatprep.subr.mxu0 0.0
        %413 = vmatpush1.msra.mxu0 0.0
        %414 = vmatprep.subr.mxu0 0.0
        %415 = vmatpush1.msra.mxu0 0.0
        %416 = vmatprep.subr.mxu0 0.0
        %417 = vmatpush1.msra.mxu0 0.0
        %418 = vmatprep.subr.mxu0 0.0
        %419 = vmatpush1.msra.mxu0 0.0
        %420 = vmatprep.subr.mxu0 0.0
        %421 = vmatpush1.msra.mxu0 0.0
        %422 = vmatprep.subr.mxu0 0.0
        %423 = vmatpush1.msra.mxu0 0.0
        %424 = vmatprep.subr.mxu0 0.0
        %425 = vmatpush1.msra.mxu0 0.0
        %426 = vmatprep.subr.mxu0 0.0
        %427 = vmatpush1.msra.mxu0 0.0
        %428 = vmatprep.subr.mxu0 0.0
        %429 = vmatpush1.msra.mxu0 0.0
        %430 = vmatprep.subr.mxu0 0.0
        %431 = vmatpush1.msra.mxu0 0.0
        %432 = vmatprep.subr.mxu0 0.0
        %433 = vmatpush1.msra.mxu0 0.0
        %434 = vmatprep.subr.mxu0 0.0
        %435 = vmatpush1.msra.mxu0 0.0
        %436 = vmatprep.subr.mxu0 0.0
        %437 = vmatpush1.msra.mxu0 0.0
        %438 = vmatprep.subr.mxu0 0.0
        %439 = vmatpush1.msra.mxu0 0.0
        %440 = vmatprep.subr.mxu0 0.0
        %441 = vmatpush1.msra.mxu0 0.0
        %442 = vmatprep.subr.mxu0 0.0
        %443 = vmatpush1.msra.mxu0 0.0
        %444 = vmatprep.subr.mxu0 0.0
        %445 = vmatpush1.msra.mxu0 0.0
        %446 = vmatprep.subr.mxu0 0.0
        %447 = vmatpush1.msra.mxu0 0.0
        %448 = vmatprep.subr.mxu0 0.0
        %449 = vmatpush1.msra.mxu0 0.0
        %450 = vmatprep.subr.mxu0 0.0
        %451 = vmatpush1.msra.mxu0 0.0
        %452 = vmatprep.subr.mxu0 0.0
        %453 = vmatpush1.msra.mxu0 0.0
        %454 = vmatprep.mubr.f32.mxu0 0.0
        %455 = vmatmul.mubr.f32.gmra.mrb[0].mxu0 %v310
        %v456 = vpop.f32.mrb[0].mxu0
        %v457 = vadd.f32 0.0, %v456
        %v458 = vpop.f32.mrb[0].mxu0
        %459 = vdwg.mxu0
        %v460 = vsel %vm309, %v292, 0
        %v462 = vsel %vm312, %v290, 0
        %v464 = vsel %vm312, %v299, 0
        %v466 = vsel %vm312, %v291, 0
        %468 = vmatprep.subr.mxu0 %v464
        %469 = vmatpush1.msra.mxu0 %v462
        %470 = vmatprep.subr.mxu0 0.0
        %471 = vmatpush1.msra.mxu0 0.0
        %472 = vmatprep.subr.mxu0 0.0
        %473 = vmatpush1.msra.mxu0 0.0
        %474 = vmatprep.subr.mxu0 0.0
        %475 = vmatpush1.msra.mxu0 0.0
        %476 = vmatprep.subr.mxu0 0.0
        %477 = vmatpush1.msra.mxu0 0.0
        %478 = vmatprep.subr.mxu0 0.0
        %479 = vmatpush1.msra.mxu0 0.0
        %480 = vmatprep.subr.mxu0 0.0
        %481 = vmatpush1.msra.mxu0 0.0
        %482 = vmatprep.subr.mxu0 0.0
        %483 = vmatpush1.msra.mxu0 0.0
        %484 = vmatprep.subr.mxu0 0.0
        %485 = vmatpush1.msra.mxu0 0.0
        %486 = vmatprep.subr.mxu0 0.0
        %487 = vmatpush1.msra.mxu0 0.0
        %488 = vmatprep.subr.mxu0 0.0
        %489 = vmatpush1.msra.mxu0 0.0
        %490 = vmatprep.subr.mxu0 0.0
        %491 = vmatpush1.msra.mxu0 0.0
        %492 = vmatprep.subr.mxu0 0.0
        %493 = vmatpush1.msra.mxu0 0.0
        %494 = vmatprep.subr.mxu0 0.0
        %495 = vmatpush1.msra.mxu0 0.0
        %496 = vmatprep.subr.mxu0 0.0
        %497 = vmatpush1.msra.mxu0 0.0
        %498 = vmatprep.subr.mxu0 0.0
        %499 = vmatpush1.msra.mxu0 0.0
        %500 = vmatprep.subr.mxu0 0.0
        %501 = vmatpush1.msra.mxu0 0.0
        %502 = vmatprep.subr.mxu0 0.0
        %503 = vmatpush1.msra.mxu0 0.0
        %504 = vmatprep.subr.mxu0 0.0
        %505 = vmatpush1.msra.mxu0 0.0
        %506 = vmatprep.subr.mxu0 0.0
        %507 = vmatpush1.msra.mxu0 0.0
        %508 = vmatprep.subr.mxu0 0.0
        %509 = vmatpush1.msra.mxu0 0.0
        %510 = vmatprep.subr.mxu0 0.0
        %511 = vmatpush1.msra.mxu0 0.0
        %512 = vmatprep.subr.mxu0 0.0
        %513 = vmatpush1.msra.mxu0 0.0
        %514 = vmatprep.subr.mxu0 0.0
        %515 = vmatpush1.msra.mxu0 0.0
        %516 = vmatprep.subr.mxu0 0.0
        %517 = vmatpush1.msra.mxu0 0.0
        %518 = vmatprep.subr.mxu0 0.0
        %519 = vmatpush1.msra.mxu0 0.0
        %520 = vmatprep.subr.mxu0 0.0
        %521 = vmatpush1.msra.mxu0 0.0
        %522 = vmatprep.subr.mxu0 0.0
        %523 = vmatpush1.msra.mxu0 0.0
        %524 = vmatprep.subr.mxu0 0.0
        %525 = vmatpush1.msra.mxu0 0.0
        %526 = vmatprep.subr.mxu0 0.0
        %527 = vmatpush1.msra.mxu0 0.0
        %528 = vmatprep.subr.mxu0 0.0
        %529 = vmatpush1.msra.mxu0 0.0
        %530 = vmatprep.subr.mxu0 0.0
        %531 = vmatpush1.msra.mxu0 0.0
        %532 = vmatprep.mubr.f32.mxu0 0.0
        %533 = vmatmul.mubr.f32.gmra.mrb[0].mxu0 %v460
        %v534 = vpop.f32.mrb[0].mxu0
        %v535 = vadd.f32 %v386, %v534
        %v536 = vpop.f32.mrb[0].mxu0
        %v537 = vadd.f32 %v388, %v536
        %538 = vdwg.mxu0
        %539 = vmatprep.subr.mxu0 0.0
        %540 = vmatpush1.msra.mxu0 %v466
        %541 = vmatprep.subr.mxu0 0.0
        %542 = vmatpush1.msra.mxu0 0.0
        %543 = vmatprep.subr.mxu0 0.0
        %544 = vmatpush1.msra.mxu0 0.0
        %545 = vmatprep.subr.mxu0 0.0
        %546 = vmatpush1.msra.mxu0 0.0
        %547 = vmatprep.subr.mxu0 0.0
        %548 = vmatpush1.msra.mxu0 0.0
        %549 = vmatprep.subr.mxu0 0.0
        %550 = vmatpush1.msra.mxu0 0.0
        %551 = vmatprep.subr.mxu0 0.0
        %552 = vmatpush1.msra.mxu0 0.0
        %553 = vmatprep.subr.mxu0 0.0
        %554 = vmatpush1.msra.mxu0 0.0
        %555 = vmatprep.subr.mxu0 0.0
        %556 = vmatpush1.msra.mxu0 0.0
        %557 = vmatprep.subr.mxu0 0.0
        %558 = vmatpush1.msra.mxu0 0.0
        %559 = vmatprep.subr.mxu0 0.0
        %560 = vmatpush1.msra.mxu0 0.0
        %561 = vmatprep.subr.mxu0 0.0
        %562 = vmatpush1.msra.mxu0 0.0
        %563 = vmatprep.subr.mxu0 0.0
        %564 = vmatpush1.msra.mxu0 0.0
        %565 = vmatprep.subr.mxu0 0.0
        %566 = vmatpush1.msra.mxu0 0.0
        %567 = vmatprep.subr.mxu0 0.0
        %568 = vmatpush1.msra.mxu0 0.0
        %569 = vmatprep.subr.mxu0 0.0
        %570 = vmatpush1.msra.mxu0 0.0
        %571 = vmatprep.subr.mxu0 0.0
        %572 = vmatpush1.msra.mxu0 0.0
        %573 = vmatprep.subr.mxu0 0.0
        %574 = vmatpush1.msra.mxu0 0.0
        %575 = vmatprep.subr.mxu0 0.0
        %576 = vmatpush1.msra.mxu0 0.0
        %577 = vmatprep.subr.mxu0 0.0
        %578 = vmatpush1.msra.mxu0 0.0
        %579 = vmatprep.subr.mxu0 0.0
        %580 = vmatpush1.msra.mxu0 0.0
        %581 = vmatprep.subr.mxu0 0.0
        %582 = vmatpush1.msra.mxu0 0.0
        %583 = vmatprep.subr.mxu0 0.0
        %584 = vmatpush1.msra.mxu0 0.0
        %585 = vmatprep.subr.mxu0 0.0
        %586 = vmatpush1.msra.mxu0 0.0
        %587 = vmatprep.subr.mxu0 0.0
        %588 = vmatpush1.msra.mxu0 0.0
        %589 = vmatprep.subr.mxu0 0.0
        %590 = vmatpush1.msra.mxu0 0.0
        %591 = vmatprep.subr.mxu0 0.0
        %592 = vmatpush1.msra.mxu0 0.0
        %593 = vmatprep.subr.mxu0 0.0
        %594 = vmatpush1.msra.mxu0 0.0
        %595 = vmatprep.subr.mxu0 0.0
        %596 = vmatpush1.msra.mxu0 0.0
        %597 = vmatprep.subr.mxu0 0.0
        %598 = vmatpush1.msra.mxu0 0.0
        %599 = vmatprep.subr.mxu0 0.0
        %600 = vmatpush1.msra.mxu0 0.0
        %601 = vmatprep.subr.mxu0 0.0
        %602 = vmatpush1.msra.mxu0 0.0
        %603 = vmatprep.mubr.f32.mxu0 0.0
        %604 = vmatmul.mubr.f32.gmra.mrb[0].mxu0 %v460
        %v605 = vpop.f32.mrb[0].mxu0
        %v606 = vadd.f32 %v457, %v605
        %v607 = vpop.f32.mrb[0].mxu0
        %608 = vdwg.mxu0
        %609 = vrot.lane.b32.xlu0 %v292, 120
        %v610 = vpop.permute.xlu0 %609
        %611 = vrot.lane.b32.xlu0 %v290, 126
        %v612 = vpop.permute.xlu0 %611
        %613 = vrot.lane.b32.xlu0 %v299, 126
        %v614 = vpop.permute.xlu0 %613
        %615 = vrot.lane.b32.xlu0 %v291, 126
        %v616 = vpop.permute.xlu0 %615
        %vm617 = vcmask 1031168
        %v618 = vsel %vm617, %v612, %v614
        %v619 = vsel %vm617, %v614, %v616
        %v620 = vsel %vm309, %v610, 0
        %v622 = vsel %vm312, %v618, 0
        %v624 = vsel %vm312, %v619, 0
        %v626 = vsel %vm312, %v616, 0
        %628 = vmatprep.subr.mxu0 %v624
        %629 = vmatpush1.msra.mxu0 %v622
        %630 = vmatprep.subr.mxu0 0.0
        %631 = vmatpush1.msra.mxu0 0.0
        %632 = vmatprep.subr.mxu0 0.0
        %633 = vmatpush1.msra.mxu0 0.0
        %634 = vmatprep.subr.mxu0 0.0
        %635 = vmatpush1.msra.mxu0 0.0
        %636 = vmatprep.subr.mxu0 0.0
        %637 = vmatpush1.msra.mxu0 0.0
        %638 = vmatprep.subr.mxu0 0.0
        %639 = vmatpush1.msra.mxu0 0.0
        %640 = vmatprep.subr.mxu0 0.0
        %641 = vmatpush1.msra.mxu0 0.0
        %642 = vmatprep.subr.mxu0 0.0
        %643 = vmatpush1.msra.mxu0 0.0
        %644 = vmatprep.subr.mxu0 0.0
        %645 = vmatpush1.msra.mxu0 0.0
        %646 = vmatprep.subr.mxu0 0.0
        %647 = vmatpush1.msra.mxu0 0.0
        %648 = vmatprep.subr.mxu0 0.0
        %649 = vmatpush1.msra.mxu0 0.0
        %650 = vmatprep.subr.mxu0 0.0
        %651 = vmatpush1.msra.mxu0 0.0
        %652 = vmatprep.subr.mxu0 0.0
        %653 = vmatpush1.msra.mxu0 0.0
        %654 = vmatprep.subr.mxu0 0.0
        %655 = vmatpush1.msra.mxu0 0.0
        %656 = vmatprep.subr.mxu0 0.0
        %657 = vmatpush1.msra.mxu0 0.0
        %658 = vmatprep.subr.mxu0 0.0
        %659 = vmatpush1.msra.mxu0 0.0
        %660 = vmatprep.subr.mxu0 0.0
        %661 = vmatpush1.msra.mxu0 0.0
        %662 = vmatprep.subr.mxu0 0.0
        %663 = vmatpush1.msra.mxu0 0.0
        %664 = vmatprep.subr.mxu0 0.0
        %665 = vmatpush1.msra.mxu0 0.0
        %666 = vmatprep.subr.mxu0 0.0
        %667 = vmatpush1.msra.mxu0 0.0
        %668 = vmatprep.subr.mxu0 0.0
        %669 = vmatpush1.msra.mxu0 0.0
        %670 = vmatprep.subr.mxu0 0.0
        %671 = vmatpush1.msra.mxu0 0.0
        %672 = vmatprep.subr.mxu0 0.0
        %673 = vmatpush1.msra.mxu0 0.0
        %674 = vmatprep.subr.mxu0 0.0
        %675 = vmatpush1.msra.mxu0 0.0
        %676 = vmatprep.subr.mxu0 0.0
        %677 = vmatpush1.msra.mxu0 0.0
        %678 = vmatprep.subr.mxu0 0.0
        %679 = vmatpush1.msra.mxu0 0.0
        %680 = vmatprep.subr.mxu0 0.0
        %681 = vmatpush1.msra.mxu0 0.0
        %682 = vmatprep.subr.mxu0 0.0
        %683 = vmatpush1.msra.mxu0 0.0
        %684 = vmatprep.subr.mxu0 0.0
        %685 = vmatpush1.msra.mxu0 0.0
        %686 = vmatprep.subr.mxu0 0.0
        %687 = vmatpush1.msra.mxu0 0.0
        %688 = vmatprep.subr.mxu0 0.0
        %689 = vmatpush1.msra.mxu0 0.0
        %690 = vmatprep.subr.mxu0 0.0
        %691 = vmatpush1.msra.mxu0 0.0
        %692 = vmatprep.mubr.f32.mxu0 0.0
        %693 = vmatmul.mubr.f32.gmra.mrb[0].mxu0 %v620
        %v694 = vpop.f32.mrb[0].mxu0
        %v695 = vadd.f32 0.0, %v694
        %v696 = vpop.f32.mrb[0].mxu0
        %v697 = vadd.f32 0.0, %v696
        %698 = vdwg.mxu0
        %699 = vmatprep.subr.mxu0 0.0
        %700 = vmatpush1.msra.mxu0 %v626
        %701 = vmatprep.subr.mxu0 0.0
        %702 = vmatpush1.msra.mxu0 0.0
        %703 = vmatprep.subr.mxu0 0.0
        %704 = vmatpush1.msra.mxu0 0.0
        %705 = vmatprep.subr.mxu0 0.0
        %706 = vmatpush1.msra.mxu0 0.0
        %707 = vmatprep.subr.mxu0 0.0
        %708 = vmatpush1.msra.mxu0 0.0
        %709 = vmatprep.subr.mxu0 0.0
        %710 = vmatpush1.msra.mxu0 0.0
        %711 = vmatprep.subr.mxu0 0.0
        %712 = vmatpush1.msra.mxu0 0.0
        %713 = vmatprep.subr.mxu0 0.0
        %714 = vmatpush1.msra.mxu0 0.0
        %715 = vmatprep.subr.mxu0 0.0
        %716 = vmatpush1.msra.mxu0 0.0
        %717 = vmatprep.subr.mxu0 0.0
        %718 = vmatpush1.msra.mxu0 0.0
        %719 = vmatprep.subr.mxu0 0.0
        %720 = vmatpush1.msra.mxu0 0.0
        %721 = vmatprep.subr.mxu0 0.0
        %722 = vmatpush1.msra.mxu0 0.0
        %723 = vmatprep.subr.mxu0 0.0
        %724 = vmatpush1.msra.mxu0 0.0
        %725 = vmatprep.subr.mxu0 0.0
        %726 = vmatpush1.msra.mxu0 0.0
        %727 = vmatprep.subr.mxu0 0.0
        %728 = vmatpush1.msra.mxu0 0.0
        %729 = vmatprep.subr.mxu0 0.0
        %730 = vmatpush1.msra.mxu0 0.0
        %731 = vmatprep.subr.mxu0 0.0
        %732 = vmatpush1.msra.mxu0 0.0
        %733 = vmatprep.subr.mxu0 0.0
        %734 = vmatpush1.msra.mxu0 0.0
        %735 = vmatprep.subr.mxu0 0.0
        %736 = vmatpush1.msra.mxu0 0.0
        %737 = vmatprep.subr.mxu0 0.0
        %738 = vmatpush1.msra.mxu0 0.0
        %739 = vmatprep.subr.mxu0 0.0
        %740 = vmatpush1.msra.mxu0 0.0
        %741 = vmatprep.subr.mxu0 0.0
        %742 = vmatpush1.msra.mxu0 0.0
        %743 = vmatprep.subr.mxu0 0.0
        %744 = vmatpush1.msra.mxu0 0.0
        %745 = vmatprep.subr.mxu0 0.0
        %746 = vmatpush1.msra.mxu0 0.0
        %747 = vmatprep.subr.mxu0 0.0
        %748 = vmatpush1.msra.mxu0 0.0
        %749 = vmatprep.subr.mxu0 0.0
        %750 = vmatpush1.msra.mxu0 0.0
        %751 = vmatprep.subr.mxu0 0.0
        %752 = vmatpush1.msra.mxu0 0.0
        %753 = vmatprep.subr.mxu0 0.0
        %754 = vmatpush1.msra.mxu0 0.0
        %755 = vmatprep.subr.mxu0 0.0
        %756 = vmatpush1.msra.mxu0 0.0
        %757 = vmatprep.subr.mxu0 0.0
        %758 = vmatpush1.msra.mxu0 0.0
        %759 = vmatprep.subr.mxu0 0.0
        %760 = vmatpush1.msra.mxu0 0.0
        %761 = vmatprep.subr.mxu0 0.0
        %762 = vmatpush1.msra.mxu0 0.0
        %763 = vmatprep.mubr.f32.mxu0 0.0
        %764 = vmatmul.mubr.f32.gmra.mrb[0].mxu0 %v620
        %v765 = vpop.f32.mrb[0].mxu0
        %v766 = vadd.f32 0.0, %v765
        %v767 = vpop.f32.mrb[0].mxu0
        %768 = vdwg.mxu0
        %v769 = vadd.f32 %v535, %v695
        %v770 = vadd.f32 %v537, %v697
        %v771 = vadd.f32 %v606, %v766
        %772 = vrot.lane.b32.xlu0 %v292, 116
        %v773 = vpop.permute.xlu0 %772
        %774 = vrot.lane.b32.xlu0 %v290, 125
        %v775 = vpop.permute.xlu0 %774
        %776 = vrot.lane.b32.xlu0 %v299, 125
        %v777 = vpop.permute.xlu0 %776
        %778 = vrot.lane.b32.xlu0 %v291, 125
        %v779 = vpop.permute.xlu0 %778
        %vm780 = vcmask 1022976
        %v781 = vsel %vm780, %v775, %v777
        %v782 = vsel %vm780, %v777, %v779
        %v783 = vsel %vm309, %v773, 0
        %v785 = vsel %vm312, %v781, 0
        %v787 = vsel %vm312, %v782, 0
        %v789 = vsel %vm312, %v779, 0
        %791 = vmatprep.subr.mxu0 %v787
        %792 = vmatpush1.msra.mxu0 %v785
        %793 = vmatprep.subr.mxu0 0.0
        %794 = vmatpush1.msra.mxu0 0.0
        %795 = vmatprep.subr.mxu0 0.0
        %796 = vmatpush1.msra.mxu0 0.0
        %797 = vmatprep.subr.mxu0 0.0
        %798 = vmatpush1.msra.mxu0 0.0
        %799 = vmatprep.subr.mxu0 0.0
        %800 = vmatpush1.msra.mxu0 0.0
        %801 = vmatprep.subr.mxu0 0.0
        %802 = vmatpush1.msra.mxu0 0.0
        %803 = vmatprep.subr.mxu0 0.0
        %804 = vmatpush1.msra.mxu0 0.0
        %805 = vmatprep.subr.mxu0 0.0
        %806 = vmatpush1.msra.mxu0 0.0
        %807 = vmatprep.subr.mxu0 0.0
        %808 = vmatpush1.msra.mxu0 0.0
        %809 = vmatprep.subr.mxu0 0.0
        %810 = vmatpush1.msra.mxu0 0.0
        %811 = vmatprep.subr.mxu0 0.0
        %812 = vmatpush1.msra.mxu0 0.0
        %813 = vmatprep.subr.mxu0 0.0
        %814 = vmatpush1.msra.mxu0 0.0
        %815 = vmatprep.subr.mxu0 0.0
        %816 = vmatpush1.msra.mxu0 0.0
        %817 = vmatprep.subr.mxu0 0.0
        %818 = vmatpush1.msra.mxu0 0.0
        %819 = vmatprep.subr.mxu0 0.0
        %820 = vmatpush1.msra.mxu0 0.0
        %821 = vmatprep.subr.mxu0 0.0
        %822 = vmatpush1.msra.mxu0 0.0
        %823 = vmatprep.subr.mxu0 0.0
        %824 = vmatpush1.msra.mxu0 0.0
        %825 = vmatprep.subr.mxu0 0.0
        %826 = vmatpush1.msra.mxu0 0.0
        %827 = vmatprep.subr.mxu0 0.0
        %828 = vmatpush1.msra.mxu0 0.0
        %829 = vmatprep.subr.mxu0 0.0
        %830 = vmatpush1.msra.mxu0 0.0
        %831 = vmatprep.subr.mxu0 0.0
        %832 = vmatpush1.msra.mxu0 0.0
        %833 = vmatprep.subr.mxu0 0.0
        %834 = vmatpush1.msra.mxu0 0.0
        %835 = vmatprep.subr.mxu0 0.0
        %836 = vmatpush1.msra.mxu0 0.0
        %837 = vmatprep.subr.mxu0 0.0
        %838 = vmatpush1.msra.mxu0 0.0
        %839 = vmatprep.subr.mxu0 0.0
        %840 = vmatpush1.msra.mxu0 0.0
        %841 = vmatprep.subr.mxu0 0.0
        %842 = vmatpush1.msra.mxu0 0.0
        %843 = vmatprep.subr.mxu0 0.0
        %844 = vmatpush1.msra.mxu0 0.0
        %845 = vmatprep.subr.mxu0 0.0
        %846 = vmatpush1.msra.mxu0 0.0
        %847 = vmatprep.subr.mxu0 0.0
        %848 = vmatpush1.msra.mxu0 0.0
        %849 = vmatprep.subr.mxu0 0.0
        %850 = vmatpush1.msra.mxu0 0.0
        %851 = vmatprep.subr.mxu0 0.0
        %852 = vmatpush1.msra.mxu0 0.0
        %853 = vmatprep.subr.mxu0 0.0
        %854 = vmatpush1.msra.mxu0 0.0
        %855 = vmatprep.mubr.f32.mxu0 0.0
        %856 = vmatmul.mubr.f32.gmra.mrb[0].mxu0 %v783
        %v857 = vpop.f32.mrb[0].mxu0
        %v858 = vadd.f32 0.0, %v857
        %v859 = vpop.f32.mrb[0].mxu0
        %v860 = vadd.f32 0.0, %v859
        %861 = vdwg.mxu0
        %862 = vmatprep.subr.mxu0 0.0
        %863 = vmatpush1.msra.mxu0 %v789
        %864 = vmatprep.subr.mxu0 0.0
        %865 = vmatpush1.msra.mxu0 0.0
        %866 = vmatprep.subr.mxu0 0.0
        %867 = vmatpush1.msra.mxu0 0.0
        %868 = vmatprep.subr.mxu0 0.0
        %869 = vmatpush1.msra.mxu0 0.0
        %870 = vmatprep.subr.mxu0 0.0
        %871 = vmatpush1.msra.mxu0 0.0
        %872 = vmatprep.subr.mxu0 0.0
        %873 = vmatpush1.msra.mxu0 0.0
        %874 = vmatprep.subr.mxu0 0.0
        %875 = vmatpush1.msra.mxu0 0.0
        %876 = vmatprep.subr.mxu0 0.0
        %877 = vmatpush1.msra.mxu0 0.0
        %878 = vmatprep.subr.mxu0 0.0
        %879 = vmatpush1.msra.mxu0 0.0
        %880 = vmatprep.subr.mxu0 0.0
        %881 = vmatpush1.msra.mxu0 0.0
        %882 = vmatprep.subr.mxu0 0.0
        %883 = vmatpush1.msra.mxu0 0.0
        %884 = vmatprep.subr.mxu0 0.0
        %885 = vmatpush1.msra.mxu0 0.0
        %886 = vmatprep.subr.mxu0 0.0
        %887 = vmatpush1.msra.mxu0 0.0
        %888 = vmatprep.subr.mxu0 0.0
        %889 = vmatpush1.msra.mxu0 0.0
        %890 = vmatprep.subr.mxu0 0.0
        %891 = vmatpush1.msra.mxu0 0.0
        %892 = vmatprep.subr.mxu0 0.0
        %893 = vmatpush1.msra.mxu0 0.0
        %894 = vmatprep.subr.mxu0 0.0
        %895 = vmatpush1.msra.mxu0 0.0
        %896 = vmatprep.subr.mxu0 0.0
        %897 = vmatpush1.msra.mxu0 0.0
        %898 = vmatprep.subr.mxu0 0.0
        %899 = vmatpush1.msra.mxu0 0.0
        %900 = vmatprep.subr.mxu0 0.0
        %901 = vmatpush1.msra.mxu0 0.0
        %902 = vmatprep.subr.mxu0 0.0
        %903 = vmatpush1.msra.mxu0 0.0
        %904 = vmatprep.subr.mxu0 0.0
        %905 = vmatpush1.msra.mxu0 0.0
        %906 = vmatprep.subr.mxu0 0.0
        %907 = vmatpush1.msra.mxu0 0.0
        %908 = vmatprep.subr.mxu0 0.0
        %909 = vmatpush1.msra.mxu0 0.0
        %910 = vmatprep.subr.mxu0 0.0
        %911 = vmatpush1.msra.mxu0 0.0
        %912 = vmatprep.subr.mxu0 0.0
        %913 = vmatpush1.msra.mxu0 0.0
        %914 = vmatprep.subr.mxu0 0.0
        %915 = vmatpush1.msra.mxu0 0.0
        %916 = vmatprep.subr.mxu0 0.0
        %917 = vmatpush1.msra.mxu0 0.0
        %918 = vmatprep.subr.mxu0 0.0
        %919 = vmatpush1.msra.mxu0 0.0
        %920 = vmatprep.subr.mxu0 0.0
        %921 = vmatpush1.msra.mxu0 0.0
        %922 = vmatprep.subr.mxu0 0.0
        %923 = vmatpush1.msra.mxu0 0.0
        %924 = vmatprep.subr.mxu0 0.0
        %925 = vmatpush1.msra.mxu0 0.0
        %926 = vmatprep.mubr.f32.mxu0 0.0
        %927 = vmatmul.mubr.f32.gmra.mrb[0].mxu0 %v783
        %v928 = vpop.f32.mrb[0].mxu0
        %v929 = vadd.f32 0.0, %v928
        %v930 = vpop.f32.mrb[0].mxu0
        %931 = vdwg.mxu0
        %v932 = vadd.f32 %v769, %v858
        %v933 = vadd.f32 %v770, %v860
        %v934 = vadd.f32 %v771, %v929
        %935 = vrot.lane.b32.xlu0 %v292, 112
        %v936 = vpop.permute.xlu0 %935
        %937 = vrot.lane.b32.xlu0 %v290, 124
        %v938 = vpop.permute.xlu0 %937
        %939 = vrot.lane.b32.xlu0 %v299, 124
        %v940 = vpop.permute.xlu0 %939
        %941 = vrot.lane.b32.xlu0 %v291, 124
        %v942 = vpop.permute.xlu0 %941
        %vm943 = vcmask 1014784
        %v944 = vsel %vm943, %v938, %v940
        %v945 = vsel %vm943, %v940, %v942
        %v946 = vsel %vm309, %v936, 0
        %v948 = vsel %vm312, %v944, 0
        %v950 = vsel %vm312, %v945, 0
        %v952 = vsel %vm312, %v942, 0
        %954 = vmatprep.subr.mxu0 %v950
        %955 = vmatpush1.msra.mxu0 %v948
        %956 = vmatprep.subr.mxu0 0.0
        %957 = vmatpush1.msra.mxu0 0.0
        %958 = vmatprep.subr.mxu0 0.0
        %959 = vmatpush1.msra.mxu0 0.0
        %960 = vmatprep.subr.mxu0 0.0
        %961 = vmatpush1.msra.mxu0 0.0
        %962 = vmatprep.subr.mxu0 0.0
        %963 = vmatpush1.msra.mxu0 0.0
        %964 = vmatprep.subr.mxu0 0.0
        %965 = vmatpush1.msra.mxu0 0.0
        %966 = vmatprep.subr.mxu0 0.0
        %967 = vmatpush1.msra.mxu0 0.0
        %968 = vmatprep.subr.mxu0 0.0
        %969 = vmatpush1.msra.mxu0 0.0
        %970 = vmatprep.subr.mxu0 0.0
        %971 = vmatpush1.msra.mxu0 0.0
        %972 = vmatprep.subr.mxu0 0.0
        %973 = vmatpush1.msra.mxu0 0.0
        %974 = vmatprep.subr.mxu0 0.0
        %975 = vmatpush1.msra.mxu0 0.0
        %976 = vmatprep.subr.mxu0 0.0
        %977 = vmatpush1.msra.mxu0 0.0
        %978 = vmatprep.subr.mxu0 0.0
        %979 = vmatpush1.msra.mxu0 0.0
        %980 = vmatprep.subr.mxu0 0.0
        %981 = vmatpush1.msra.mxu0 0.0
        %982 = vmatprep.subr.mxu0 0.0
        %983 = vmatpush1.msra.mxu0 0.0
        %984 = vmatprep.subr.mxu0 0.0
        %985 = vmatpush1.msra.mxu0 0.0
        %986 = vmatprep.subr.mxu0 0.0
        %987 = vmatpush1.msra.mxu0 0.0
        %988 = vmatprep.subr.mxu0 0.0
        %989 = vmatpush1.msra.mxu0 0.0
        %990 = vmatprep.subr.mxu0 0.0
        %991 = vmatpush1.msra.mxu0 0.0
        %992 = vmatprep.subr.mxu0 0.0
        %993 = vmatpush1.msra.mxu0 0.0
        %994 = vmatprep.subr.mxu0 0.0
        %995 = vmatpush1.msra.mxu0 0.0
        %996 = vmatprep.subr.mxu0 0.0
        %997 = vmatpush1.msra.mxu0 0.0
        %998 = vmatprep.subr.mxu0 0.0
        %999 = vmatpush1.msra.mxu0 0.0
        %1000 = vmatprep.subr.mxu0 0.0
        %1001 = vmatpush1.msra.mxu0 0.0
        %1002 = vmatprep.subr.mxu0 0.0
        %1003 = vmatpush1.msra.mxu0 0.0
        %1004 = vmatprep.subr.mxu0 0.0
        %1005 = vmatpush1.msra.mxu0 0.0
        %1006 = vmatprep.subr.mxu0 0.0
        %1007 = vmatpush1.msra.mxu0 0.0
        %1008 = vmatprep.subr.mxu0 0.0
        %1009 = vmatpush1.msra.mxu0 0.0
        %1010 = vmatprep.subr.mxu0 0.0
        %1011 = vmatpush1.msra.mxu0 0.0
        %1012 = vmatprep.subr.mxu0 0.0
        %1013 = vmatpush1.msra.mxu0 0.0
        %1014 = vmatprep.subr.mxu0 0.0
        %1015 = vmatpush1.msra.mxu0 0.0
        %1016 = vmatprep.subr.mxu0 0.0
        %1017 = vmatpush1.msra.mxu0 0.0
        %1018 = vmatprep.mubr.f32.mxu0 0.0
        %1019 = vmatmul.mubr.f32.gmra.mrb[0].mxu0 %v946
        %v1020 = vpop.f32.mrb[0].mxu0
        %v1021 = vadd.f32 0.0, %v1020
        %v1022 = vpop.f32.mrb[0].mxu0
        %v1023 = vadd.f32 0.0, %v1022
        %1024 = vdwg.mxu0
        %1025 = vmatprep.subr.mxu0 0.0
        %1026 = vmatpush1.msra.mxu0 %v952
        %1027 = vmatprep.subr.mxu0 0.0
        %1028 = vmatpush1.msra.mxu0 0.0
        %1029 = vmatprep.subr.mxu0 0.0
        %1030 = vmatpush1.msra.mxu0 0.0
        %1031 = vmatprep.subr.mxu0 0.0
        %1032 = vmatpush1.msra.mxu0 0.0
        %1033 = vmatprep.subr.mxu0 0.0
        %1034 = vmatpush1.msra.mxu0 0.0
        %1035 = vmatprep.subr.mxu0 0.0
        %1036 = vmatpush1.msra.mxu0 0.0
        %1037 = vmatprep.subr.mxu0 0.0
        %1038 = vmatpush1.msra.mxu0 0.0
        %1039 = vmatprep.subr.mxu0 0.0
        %1040 = vmatpush1.msra.mxu0 0.0
        %1041 = vmatprep.subr.mxu0 0.0
        %1042 = vmatpush1.msra.mxu0 0.0
        %1043 = vmatprep.subr.mxu0 0.0
        %1044 = vmatpush1.msra.mxu0 0.0
        %1045 = vmatprep.subr.mxu0 0.0
        %1046 = vmatpush1.msra.mxu0 0.0
        %1047 = vmatprep.subr.mxu0 0.0
        %1048 = vmatpush1.msra.mxu0 0.0
        %1049 = vmatprep.subr.mxu0 0.0
        %1050 = vmatpush1.msra.mxu0 0.0
        %1051 = vmatprep.subr.mxu0 0.0
        %1052 = vmatpush1.msra.mxu0 0.0
        %1053 = vmatprep.subr.mxu0 0.0
        %1054 = vmatpush1.msra.mxu0 0.0
        %1055 = vmatprep.subr.mxu0 0.0
        %1056 = vmatpush1.msra.mxu0 0.0
        %1057 = vmatprep.subr.mxu0 0.0
        %1058 = vmatpush1.msra.mxu0 0.0
        %1059 = vmatprep.subr.mxu0 0.0
        %1060 = vmatpush1.msra.mxu0 0.0
        %1061 = vmatprep.subr.mxu0 0.0
        %1062 = vmatpush1.msra.mxu0 0.0
        %1063 = vmatprep.subr.mxu0 0.0
        %1064 = vmatpush1.msra.mxu0 0.0
        %1065 = vmatprep.subr.mxu0 0.0
        %1066 = vmatpush1.msra.mxu0 0.0
        %1067 = vmatprep.subr.mxu0 0.0
        %1068 = vmatpush1.msra.mxu0 0.0
        %1069 = vmatprep.subr.mxu0 0.0
        %1070 = vmatpush1.msra.mxu0 0.0
        %1071 = vmatprep.subr.mxu0 0.0
        %1072 = vmatpush1.msra.mxu0 0.0
        %1073 = vmatprep.subr.mxu0 0.0
        %1074 = vmatpush1.msra.mxu0 0.0
        %1075 = vmatprep.subr.mxu0 0.0
        %1076 = vmatpush1.msra.mxu0 0.0
        %1077 = vmatprep.subr.mxu0 0.0
        %1078 = vmatpush1.msra.mxu0 0.0
        %1079 = vmatprep.subr.mxu0 0.0
        %1080 = vmatpush1.msra.mxu0 0.0
        %1081 = vmatprep.subr.mxu0 0.0
        %1082 = vmatpush1.msra.mxu0 0.0
        %1083 = vmatprep.subr.mxu0 0.0
        %1084 = vmatpush1.msra.mxu0 0.0
        %1085 = vmatprep.subr.mxu0 0.0
        %1086 = vmatpush1.msra.mxu0 0.0
        %1087 = vmatprep.subr.mxu0 0.0
        %1088 = vmatpush1.msra.mxu0 0.0
        %1089 = vmatprep.mubr.f32.mxu0 0.0
        %1090 = vmatmul.mubr.f32.gmra.mrb[0].mxu0 %v946
        %v1091 = vpop.f32.mrb[0].mxu0
        %v1092 = vadd.f32 0.0, %v1091
        %v1093 = vpop.f32.mrb[0].mxu0
        %1094 = vdwg.mxu0
        %v1095 = vadd.f32 %v932, %v1021
        %v1096 = vadd.f32 %v933, %v1023
        %v1097 = vadd.f32 %v934, %v1092
        %1098 = vrot.lane.b32.xlu0 %v292, 108
        %v1099 = vpop.permute.xlu0 %1098
        %1100 = vrot.lane.b32.xlu0 %v290, 123
        %v1101 = vpop.permute.xlu0 %1100
        %1102 = vrot.lane.b32.xlu0 %v299, 123
        %v1103 = vpop.permute.xlu0 %1102
        %1104 = vrot.lane.b32.xlu0 %v291, 123
        %v1105 = vpop.permute.xlu0 %1104
        %vm1106 = vcmask 1006592
        %v1107 = vsel %vm1106, %v1101, %v1103
        %v1108 = vsel %vm1106, %v1103, %v1105
        %v1109 = vsel %vm309, %v1099, 0
        %v1111 = vsel %vm312, %v1107, 0
        %v1113 = vsel %vm312, %v1108, 0
        %v1115 = vsel %vm312, %v1105, 0
        %1117 = vmatprep.subr.mxu0 %v1113
        %1118 = vmatpush1.msra.mxu0 %v1111
        %1119 = vmatprep.subr.mxu0 0.0
        %1120 = vmatpush1.msra.mxu0 0.0
        %1121 = vmatprep.subr.mxu0 0.0
        %1122 = vmatpush1.msra.mxu0 0.0
        %1123 = vmatprep.subr.mxu0 0.0
        %1124 = vmatpush1.msra.mxu0 0.0
        %1125 = vmatprep.subr.mxu0 0.0
        %1126 = vmatpush1.msra.mxu0 0.0
        %1127 = vmatprep.subr.mxu0 0.0
        %1128 = vmatpush1.msra.mxu0 0.0
        %1129 = vmatprep.subr.mxu0 0.0
        %1130 = vmatpush1.msra.mxu0 0.0
        %1131 = vmatprep.subr.mxu0 0.0
        %1132 = vmatpush1.msra.mxu0 0.0
        %1133 = vmatprep.subr.mxu0 0.0
        %1134 = vmatpush1.msra.mxu0 0.0
        %1135 = vmatprep.subr.mxu0 0.0
        %1136 = vmatpush1.msra.mxu0 0.0
        %1137 = vmatprep.subr.mxu0 0.0
        %1138 = vmatpush1.msra.mxu0 0.0
        %1139 = vmatprep.subr.mxu0 0.0
        %1140 = vmatpush1.msra.mxu0 0.0
        %1141 = vmatprep.subr.mxu0 0.0
        %1142 = vmatpush1.msra.mxu0 0.0
        %1143 = vmatprep.subr.mxu0 0.0
        %1144 = vmatpush1.msra.mxu0 0.0
        %1145 = vmatprep.subr.mxu0 0.0
        %1146 = vmatpush1.msra.mxu0 0.0
        %1147 = vmatprep.subr.mxu0 0.0
        %1148 = vmatpush1.msra.mxu0 0.0
        %1149 = vmatprep.subr.mxu0 0.0
        %1150 = vmatpush1.msra.mxu0 0.0
        %1151 = vmatprep.subr.mxu0 0.0
        %1152 = vmatpush1.msra.mxu0 0.0
        %1153 = vmatprep.subr.mxu0 0.0
        %1154 = vmatpush1.msra.mxu0 0.0
        %1155 = vmatprep.subr.mxu0 0.0
        %1156 = vmatpush1.msra.mxu0 0.0
        %1157 = vmatprep.subr.mxu0 0.0
        %1158 = vmatpush1.msra.mxu0 0.0
        %1159 = vmatprep.subr.mxu0 0.0
        %1160 = vmatpush1.msra.mxu0 0.0
        %1161 = vmatprep.subr.mxu0 0.0
        %1162 = vmatpush1.msra.mxu0 0.0
        %1163 = vmatprep.subr.mxu0 0.0
        %1164 = vmatpush1.msra.mxu0 0.0
        %1165 = vmatprep.subr.mxu0 0.0
        %1166 = vmatpush1.msra.mxu0 0.0
        %1167 = vmatprep.subr.mxu0 0.0
        %1168 = vmatpush1.msra.mxu0 0.0
        %1169 = vmatprep.subr.mxu0 0.0
        %1170 = vmatpush1.msra.mxu0 0.0
        %1171 = vmatprep.subr.mxu0 0.0
        %1172 = vmatpush1.msra.mxu0 0.0
        %1173 = vmatprep.subr.mxu0 0.0
        %1174 = vmatpush1.msra.mxu0 0.0
        %1175 = vmatprep.subr.mxu0 0.0
        %1176 = vmatpush1.msra.mxu0 0.0
        %1177 = vmatprep.subr.mxu0 0.0
        %1178 = vmatpush1.msra.mxu0 0.0
        %1179 = vmatprep.subr.mxu0 0.0
        %1180 = vmatpush1.msra.mxu0 0.0
        %1181 = vmatprep.mubr.f32.mxu0 0.0
        %1182 = vmatmul.mubr.f32.gmra.mrb[0].mxu0 %v1109
        %v1183 = vpop.f32.mrb[0].mxu0
        %v1184 = vadd.f32 0.0, %v1183
        %v1185 = vpop.f32.mrb[0].mxu0
        %v1186 = vadd.f32 0.0, %v1185
        %1187 = vdwg.mxu0
        %1188 = vmatprep.subr.mxu0 0.0
        %1189 = vmatpush1.msra.mxu0 %v1115
        %1190 = vmatprep.subr.mxu0 0.0
        %1191 = vmatpush1.msra.mxu0 0.0
        %1192 = vmatprep.subr.mxu0 0.0
        %1193 = vmatpush1.msra.mxu0 0.0
        %1194 = vmatprep.subr.mxu0 0.0
        %1195 = vmatpush1.msra.mxu0 0.0
        %1196 = vmatprep.subr.mxu0 0.0
        %1197 = vmatpush1.msra.mxu0 0.0
        %1198 = vmatprep.subr.mxu0 0.0
        %1199 = vmatpush1.msra.mxu0 0.0
        %1200 = vmatprep.subr.mxu0 0.0
        %1201 = vmatpush1.msra.mxu0 0.0
        %1202 = vmatprep.subr.mxu0 0.0
        %1203 = vmatpush1.msra.mxu0 0.0
        %1204 = vmatprep.subr.mxu0 0.0
        %1205 = vmatpush1.msra.mxu0 0.0
        %1206 = vmatprep.subr.mxu0 0.0
        %1207 = vmatpush1.msra.mxu0 0.0
        %1208 = vmatprep.subr.mxu0 0.0
        %1209 = vmatpush1.msra.mxu0 0.0
        %1210 = vmatprep.subr.mxu0 0.0
        %1211 = vmatpush1.msra.mxu0 0.0
        %1212 = vmatprep.subr.mxu0 0.0
        %1213 = vmatpush1.msra.mxu0 0.0
        %1214 = vmatprep.subr.mxu0 0.0
        %1215 = vmatpush1.msra.mxu0 0.0
        %1216 = vmatprep.subr.mxu0 0.0
        %1217 = vmatpush1.msra.mxu0 0.0
        %1218 = vmatprep.subr.mxu0 0.0
        %1219 = vmatpush1.msra.mxu0 0.0
        %1220 = vmatprep.subr.mxu0 0.0
        %1221 = vmatpush1.msra.mxu0 0.0
        %1222 = vmatprep.subr.mxu0 0.0
        %1223 = vmatpush1.msra.mxu0 0.0
        %1224 = vmatprep.subr.mxu0 0.0
        %1225 = vmatpush1.msra.mxu0 0.0
        %1226 = vmatprep.subr.mxu0 0.0
        %1227 = vmatpush1.msra.mxu0 0.0
        %1228 = vmatprep.subr.mxu0 0.0
        %1229 = vmatpush1.msra.mxu0 0.0
        %1230 = vmatprep.subr.mxu0 0.0
        %1231 = vmatpush1.msra.mxu0 0.0
        %1232 = vmatprep.subr.mxu0 0.0
        %1233 = vmatpush1.msra.mxu0 0.0
        %1234 = vmatprep.subr.mxu0 0.0
        %1235 = vmatpush1.msra.mxu0 0.0
        %1236 = vmatprep.subr.mxu0 0.0
        %1237 = vmatpush1.msra.mxu0 0.0
        %1238 = vmatprep.subr.mxu0 0.0
        %1239 = vmatpush1.msra.mxu0 0.0
        %1240 = vmatprep.subr.mxu0 0.0
        %1241 = vmatpush1.msra.mxu0 0.0
        %1242 = vmatprep.subr.mxu0 0.0
        %1243 = vmatpush1.msra.mxu0 0.0
        %1244 = vmatprep.subr.mxu0 0.0
        %1245 = vmatpush1.msra.mxu0 0.0
        %1246 = vmatprep.subr.mxu0 0.0
        %1247 = vmatpush1.msra.mxu0 0.0
        %1248 = vmatprep.subr.mxu0 0.0
        %1249 = vmatpush1.msra.mxu0 0.0
        %1250 = vmatprep.subr.mxu0 0.0
        %1251 = vmatpush1.msra.mxu0 0.0
        %1252 = vmatprep.mubr.f32.mxu0 0.0
        %1253 = vmatmul.mubr.f32.gmra.mrb[0].mxu0 %v1109
        %v1254 = vpop.f32.mrb[0].mxu0
        %v1255 = vadd.f32 0.0, %v1254
        %v1256 = vpop.f32.mrb[0].mxu0
        %1257 = vdwg.mxu0
        %v1258 = vadd.f32 %v1095, %v1184
        %v1259 = vadd.f32 %v1096, %v1186
        %v1260 = vadd.f32 %v1097, %v1255
        %1261 = vrot.lane.b32.xlu0 %v292, 104
        %v1262 = vpop.permute.xlu0 %1261
        %1263 = vrot.lane.b32.xlu0 %v290, 122
        %v1264 = vpop.permute.xlu0 %1263
        %1265 = vrot.lane.b32.xlu0 %v299, 122
        %v1266 = vpop.permute.xlu0 %1265
        %1267 = vrot.lane.b32.xlu0 %v291, 122
        %v1268 = vpop.permute.xlu0 %1267
        %vm1269 = vcmask 998400
        %v1270 = vsel %vm1269, %v1264, %v1266
        %v1271 = vsel %vm1269, %v1266, %v1268
        %v1272 = vsel %vm309, %v1262, 0
        %v1274 = vsel %vm312, %v1270, 0
        %v1276 = vsel %vm312, %v1271, 0
        %v1278 = vsel %vm312, %v1268, 0
        %1280 = vmatprep.subr.mxu0 %v1276
        %1281 = vmatpush1.msra.mxu0 %v1274
        %1282 = vmatprep.subr.mxu0 0.0
        %1283 = vmatpush1.msra.mxu0 0.0
        %1284 = vmatprep.subr.mxu0 0.0
        %1285 = vmatpush1.msra.mxu0 0.0
        %1286 = vmatprep.subr.mxu0 0.0
        %1287 = vmatpush1.msra.mxu0 0.0
        %1288 = vmatprep.subr.mxu0 0.0
        %1289 = vmatpush1.msra.mxu0 0.0
        %1290 = vmatprep.subr.mxu0 0.0
        %1291 = vmatpush1.msra.mxu0 0.0
        %1292 = vmatprep.subr.mxu0 0.0
        %1293 = vmatpush1.msra.mxu0 0.0
        %1294 = vmatprep.subr.mxu0 0.0
        %1295 = vmatpush1.msra.mxu0 0.0
        %1296 = vmatprep.subr.mxu0 0.0
        %1297 = vmatpush1.msra.mxu0 0.0
        %1298 = vmatprep.subr.mxu0 0.0
        %1299 = vmatpush1.msra.mxu0 0.0
        %1300 = vmatprep.subr.mxu0 0.0
        %1301 = vmatpush1.msra.mxu0 0.0
        %1302 = vmatprep.subr.mxu0 0.0
        %1303 = vmatpush1.msra.mxu0 0.0
        %1304 = vmatprep.subr.mxu0 0.0
        %1305 = vmatpush1.msra.mxu0 0.0
        %1306 = vmatprep.subr.mxu0 0.0
        %1307 = vmatpush1.msra.mxu0 0.0
        %1308 = vmatprep.subr.mxu0 0.0
        %1309 = vmatpush1.msra.mxu0 0.0
        %1310 = vmatprep.subr.mxu0 0.0
        %1311 = vmatpush1.msra.mxu0 0.0
        %1312 = vmatprep.subr.mxu0 0.0
        %1313 = vmatpush1.msra.mxu0 0.0
        %1314 = vmatprep.subr.mxu0 0.0
        %1315 = vmatpush1.msra.mxu0 0.0
        %1316 = vmatprep.subr.mxu0 0.0
        %1317 = vmatpush1.msra.mxu0 0.0
        %1318 = vmatprep.subr.mxu0 0.0
        %1319 = vmatpush1.msra.mxu0 0.0
        %1320 = vmatprep.subr.mxu0 0.0
        %1321 = vmatpush1.msra.mxu0 0.0
        %1322 = vmatprep.subr.mxu0 0.0
        %1323 = vmatpush1.msra.mxu0 0.0
        %1324 = vmatprep.subr.mxu0 0.0
        %1325 = vmatpush1.msra.mxu0 0.0
        %1326 = vmatprep.subr.mxu0 0.0
        %1327 = vmatpush1.msra.mxu0 0.0
        %1328 = vmatprep.subr.mxu0 0.0
        %1329 = vmatpush1.msra.mxu0 0.0
        %1330 = vmatprep.subr.mxu0 0.0
        %1331 = vmatpush1.msra.mxu0 0.0
        %1332 = vmatprep.subr.mxu0 0.0
        %1333 = vmatpush1.msra.mxu0 0.0
        %1334 = vmatprep.subr.mxu0 0.0
        %1335 = vmatpush1.msra.mxu0 0.0
        %1336 = vmatprep.subr.mxu0 0.0
        %1337 = vmatpush1.msra.mxu0 0.0
        %1338 = vmatprep.subr.mxu0 0.0
        %1339 = vmatpush1.msra.mxu0 0.0
        %1340 = vmatprep.subr.mxu0 0.0
        %1341 = vmatpush1.msra.mxu0 0.0
        %1342 = vmatprep.subr.mxu0 0.0
        %1343 = vmatpush1.msra.mxu0 0.0
        %1344 = vmatprep.mubr.f32.mxu0 0.0
        %1345 = vmatmul.mubr.f32.gmra.mrb[0].mxu0 %v1272
        %v1346 = vpop.f32.mrb[0].mxu0
        %v1347 = vadd.f32 0.0, %v1346
        %v1348 = vpop.f32.mrb[0].mxu0
        %v1349 = vadd.f32 0.0, %v1348
        %1350 = vdwg.mxu0
        %1351 = vmatprep.subr.mxu0 0.0
        %1352 = vmatpush1.msra.mxu0 %v1278
        %1353 = vmatprep.subr.mxu0 0.0
        %1354 = vmatpush1.msra.mxu0 0.0
        %1355 = vmatprep.subr.mxu0 0.0
        %1356 = vmatpush1.msra.mxu0 0.0
        %1357 = vmatprep.subr.mxu0 0.0
        %1358 = vmatpush1.msra.mxu0 0.0
        %1359 = vmatprep.subr.mxu0 0.0
        %1360 = vmatpush1.msra.mxu0 0.0
        %1361 = vmatprep.subr.mxu0 0.0
        %1362 = vmatpush1.msra.mxu0 0.0
        %1363 = vmatprep.subr.mxu0 0.0
        %1364 = vmatpush1.msra.mxu0 0.0
        %1365 = vmatprep.subr.mxu0 0.0
        %1366 = vmatpush1.msra.mxu0 0.0
        %1367 = vmatprep.subr.mxu0 0.0
        %1368 = vmatpush1.msra.mxu0 0.0
        %1369 = vmatprep.subr.mxu0 0.0
        %1370 = vmatpush1.msra.mxu0 0.0
        %1371 = vmatprep.subr.mxu0 0.0
        %1372 = vmatpush1.msra.mxu0 0.0
        %1373 = vmatprep.subr.mxu0 0.0
        %1374 = vmatpush1.msra.mxu0 0.0
        %1375 = vmatprep.subr.mxu0 0.0
        %1376 = vmatpush1.msra.mxu0 0.0
        %1377 = vmatprep.subr.mxu0 0.0
        %1378 = vmatpush1.msra.mxu0 0.0
        %1379 = vmatprep.subr.mxu0 0.0
        %1380 = vmatpush1.msra.mxu0 0.0
        %1381 = vmatprep.subr.mxu0 0.0
        %1382 = vmatpush1.msra.mxu0 0.0
        %1383 = vmatprep.subr.mxu0 0.0
        %1384 = vmatpush1.msra.mxu0 0.0
        %1385 = vmatprep.subr.mxu0 0.0
        %1386 = vmatpush1.msra.mxu0 0.0
        %1387 = vmatprep.subr.mxu0 0.0
        %1388 = vmatpush1.msra.mxu0 0.0
        %1389 = vmatprep.subr.mxu0 0.0
        %1390 = vmatpush1.msra.mxu0 0.0
        %1391 = vmatprep.subr.mxu0 0.0
        %1392 = vmatpush1.msra.mxu0 0.0
        %1393 = vmatprep.subr.mxu0 0.0
        %1394 = vmatpush1.msra.mxu0 0.0
        %1395 = vmatprep.subr.mxu0 0.0
        %1396 = vmatpush1.msra.mxu0 0.0
        %1397 = vmatprep.subr.mxu0 0.0
        %1398 = vmatpush1.msra.mxu0 0.0
        %1399 = vmatprep.subr.mxu0 0.0
        %1400 = vmatpush1.msra.mxu0 0.0
        %1401 = vmatprep.subr.mxu0 0.0
        %1402 = vmatpush1.msra.mxu0 0.0
        %1403 = vmatprep.subr.mxu0 0.0
        %1404 = vmatpush1.msra.mxu0 0.0
        %1405 = vmatprep.subr.mxu0 0.0
        %1406 = vmatpush1.msra.mxu0 0.0
        %1407 = vmatprep.subr.mxu0 0.0
        %1408 = vmatpush1.msra.mxu0 0.0
        %1409 = vmatprep.subr.mxu0 0.0
        %1410 = vmatpush1.msra.mxu0 0.0
        %1411 = vmatprep.subr.mxu0 0.0
        %1412 = vmatpush1.msra.mxu0 0.0
        %1413 = vmatprep.subr.mxu0 0.0
        %1414 = vmatpush1.msra.mxu0 0.0
        %1415 = vmatprep.mubr.f32.mxu0 0.0
        %1416 = vmatmul.mubr.f32.gmra.mrb[0].mxu0 %v1272
        %v1417 = vpop.f32.mrb[0].mxu0
        %v1418 = vadd.f32 0.0, %v1417
        %v1419 = vpop.f32.mrb[0].mxu0
        %1420 = vdwg.mxu0
        %v1421 = vadd.f32 %v1258, %v1347
        %v1422 = vadd.f32 %v1259, %v1349
        %v1423 = vadd.f32 %v1260, %v1418
        %v1424 = vld [vmem:[%s3] sm:$0xf]
        %1426 = vset.pattern.permute.xlu0 0
        %1427 = vperm.xlu0 %1426, %v1424
        %v1428 = vpop.permute.xlu0 %1427
        %v1430 = vadd.f32 %v1421, %v1428
        %v1431 = vadd.f32 %v1422, %v1428
        %v1432 = vadd.f32 %v1423, %v1428
        %v1433 = vmax.f32 %v1430, 0.0
        %v1434 = vmax.f32 %v1431, 0.0
        %v1435 = vmax.f32 %v1432, 0.0
        %v1436 = vlaneseq
        %v1437 = vand.u32 %v1436, 127
        %v1438 = vadd.s32 %v1437, 128
        %v1439 = vadd.s32 %v1437, 256
        %v1440 = vadd.s32 %v1437, 4294967293
        %v1441 = vadd.s32 %v1438, 4294967293
        %v1442 = vadd.s32 %v1439, 4294967293
        %vm1443 = vcmp.ge.s32.totalorder %v1440, 0
        %vm1444 = vcmp.ge.s32.totalorder %v1441, 0
        %vm1445 = vcmp.ge.s32.totalorder %v1442, 0
        %vm1446 = vcmp.lt.s32.totalorder %v1440, 256
        %vm1447 = vcmp.lt.s32.totalorder %v1441, 256
        %vm1448 = vcmp.lt.s32.totalorder %v1442, 256
        %vm1449 = vmand %vm1443, %vm1446
        %vm1450 = vmand %vm1444, %vm1447
        %vm1451 = vmand %vm1445, %vm1448
        %v1452 = vsel %vm1449, 1, 0
        %v1453 = vsel %vm1450, 1, 0
        %v1454 = vsel %vm1451, 1, 0
        %vm1455 = vcmp.eq.s32.totalorder %v1452, 1
        %vm1456 = vcmp.eq.s32.totalorder %v1453, 1
        %vm1457 = vcmp.eq.s32.totalorder %v1454, 1
        %v1458 = vsel %vm1455, %v1433, 0.0
        %v1459 = vsel %vm1456, %v1434, 0.0
        %v1460 = vsel %vm1457, %v1435, 0.0
        %1462 = vrot.lane.b32.xlu0 %v293, 124
        %v1463 = vpop.permute.xlu0 %1462
        %1467 = vrot.lane.b32.xlu0 %v1458, 127
        %v1468 = vpop.permute.xlu0 %1467
        %1469 = vrot.lane.b32.xlu0 %v1459, 127
        %v1470 = vpop.permute.xlu0 %1469
        %1471 = vrot.lane.b32.xlu0 %v1460, 127
        %v1472 = vpop.permute.xlu0 %1471
        %v1473 = vsel %vm306, %v1468, %v1470
        %v1474 = vsel %vm306, %v1470, %v1472
        %v1475 = vsel %vm309, %v1463, 0
        %v1477 = vsel %vm312, %v1473, 0
        %v1479 = vsel %vm312, %v1474, 0
        %1481 = vmatprep.subr.mxu0 %v1479
        %1482 = vmatpush1.msra.mxu0 %v1477
        %1483 = vmatprep.subr.mxu0 0.0
        %1484 = vmatpush1.msra.mxu0 0.0
        %1485 = vmatprep.subr.mxu0 0.0
        %1486 = vmatpush1.msra.mxu0 0.0
        %1487 = vmatprep.subr.mxu0 0.0
        %1488 = vmatpush1.msra.mxu0 0.0
        %1489 = vmatprep.subr.mxu0 0.0
        %1490 = vmatpush1.msra.mxu0 0.0
        %1491 = vmatprep.subr.mxu0 0.0
        %1492 = vmatpush1.msra.mxu0 0.0
        %1493 = vmatprep.subr.mxu0 0.0
        %1494 = vmatpush1.msra.mxu0 0.0
        %1495 = vmatprep.subr.mxu0 0.0
        %1496 = vmatpush1.msra.mxu0 0.0
        %1497 = vmatprep.subr.mxu0 0.0
        %1498 = vmatpush1.msra.mxu0 0.0
        %1499 = vmatprep.subr.mxu0 0.0
        %1500 = vmatpush1.msra.mxu0 0.0
        %1501 = vmatprep.subr.mxu0 0.0
        %1502 = vmatpush1.msra.mxu0 0.0
        %1503 = vmatprep.subr.mxu0 0.0
        %1504 = vmatpush1.msra.mxu0 0.0
        %1505 = vmatprep.subr.mxu0 0.0
        %1506 = vmatpush1.msra.mxu0 0.0
        %1507 = vmatprep.subr.mxu0 0.0
        %1508 = vmatpush1.msra.mxu0 0.0
        %1509 = vmatprep.subr.mxu0 0.0
        %1510 = vmatpush1.msra.mxu0 0.0
        %1511 = vmatprep.subr.mxu0 0.0
        %1512 = vmatpush1.msra.mxu0 0.0
        %1513 = vmatprep.subr.mxu0 0.0
        %1514 = vmatpush1.msra.mxu0 0.0
        %1515 = vmatprep.subr.mxu0 0.0
        %1516 = vmatpush1.msra.mxu0 0.0
        %1517 = vmatprep.subr.mxu0 0.0
        %1518 = vmatpush1.msra.mxu0 0.0
        %1519 = vmatprep.subr.mxu0 0.0
        %1520 = vmatpush1.msra.mxu0 0.0
        %1521 = vmatprep.subr.mxu0 0.0
        %1522 = vmatpush1.msra.mxu0 0.0
        %1523 = vmatprep.subr.mxu0 0.0
        %1524 = vmatpush1.msra.mxu0 0.0
        %1525 = vmatprep.subr.mxu0 0.0
        %1526 = vmatpush1.msra.mxu0 0.0
        %1527 = vmatprep.subr.mxu0 0.0
        %1528 = vmatpush1.msra.mxu0 0.0
        %1529 = vmatprep.subr.mxu0 0.0
        %1530 = vmatpush1.msra.mxu0 0.0
        %1531 = vmatprep.subr.mxu0 0.0
        %1532 = vmatpush1.msra.mxu0 0.0
        %1533 = vmatprep.subr.mxu0 0.0
        %1534 = vmatpush1.msra.mxu0 0.0
        %1535 = vmatprep.subr.mxu0 0.0
        %1536 = vmatpush1.msra.mxu0 0.0
        %1537 = vmatprep.subr.mxu0 0.0
        %1538 = vmatpush1.msra.mxu0 0.0
        %1539 = vmatprep.subr.mxu0 0.0
        %1540 = vmatpush1.msra.mxu0 0.0
        %1541 = vmatprep.subr.mxu0 0.0
        %1542 = vmatpush1.msra.mxu0 0.0
        %1543 = vmatprep.subr.mxu0 0.0
        %1544 = vmatpush1.msra.mxu0 0.0
        %1545 = vmatprep.mubr.f32.mxu0 0.0
        %1546 = vmatmul.mubr.f32.gmra.mrb[0].mxu0 %v1475
        %v1547 = vpop.f32.mrb[0].mxu0
        %v1548 = vadd.f32 0.0, %v1547
        %v1549 = vpop.f32.mrb[0].mxu0
        %v1550 = vadd.f32 0.0, %v1549
        %1551 = vdwg.mxu0
        %v1552 = vsel %vm309, %v293, 0
        %v1554 = vsel %vm312, %v1458, 0
        %v1556 = vsel %vm312, %v1459, 0
        %1558 = vmatprep.subr.mxu0 %v1556
        %1559 = vmatpush1.msra.mxu0 %v1554
        %1560 = vmatprep.subr.mxu0 0.0
        %1561 = vmatpush1.msra.mxu0 0.0
        %1562 = vmatprep.subr.mxu0 0.0
        %1563 = vmatpush1.msra.mxu0 0.0
        %1564 = vmatprep.subr.mxu0 0.0
        %1565 = vmatpush1.msra.mxu0 0.0
        %1566 = vmatprep.subr.mxu0 0.0
        %1567 = vmatpush1.msra.mxu0 0.0
        %1568 = vmatprep.subr.mxu0 0.0
        %1569 = vmatpush1.msra.mxu0 0.0
        %1570 = vmatprep.subr.mxu0 0.0
        %1571 = vmatpush1.msra.mxu0 0.0
        %1572 = vmatprep.subr.mxu0 0.0
        %1573 = vmatpush1.msra.mxu0 0.0
        %1574 = vmatprep.subr.mxu0 0.0
        %1575 = vmatpush1.msra.mxu0 0.0
        %1576 = vmatprep.subr.mxu0 0.0
        %1577 = vmatpush1.msra.mxu0 0.0
        %1578 = vmatprep.subr.mxu0 0.0
        %1579 = vmatpush1.msra.mxu0 0.0
        %1580 = vmatprep.subr.mxu0 0.0
        %1581 = vmatpush1.msra.mxu0 0.0
        %1582 = vmatprep.subr.mxu0 0.0
        %1583 = vmatpush1.msra.mxu0 0.0
        %1584 = vmatprep.subr.mxu0 0.0
        %1585 = vmatpush1.msra.mxu0 0.0
        %1586 = vmatprep.subr.mxu0 0.0
        %1587 = vmatpush1.msra.mxu0 0.0
        %1588 = vmatprep.subr.mxu0 0.0
        %1589 = vmatpush1.msra.mxu0 0.0
        %1590 = vmatprep.subr.mxu0 0.0
        %1591 = vmatpush1.msra.mxu0 0.0
        %1592 = vmatprep.subr.mxu0 0.0
        %1593 = vmatpush1.msra.mxu0 0.0
        %1594 = vmatprep.subr.mxu0 0.0
        %1595 = vmatpush1.msra.mxu0 0.0
        %1596 = vmatprep.subr.mxu0 0.0
        %1597 = vmatpush1.msra.mxu0 0.0
        %1598 = vmatprep.subr.mxu0 0.0
        %1599 = vmatpush1.msra.mxu0 0.0
        %1600 = vmatprep.subr.mxu0 0.0
        %1601 = vmatpush1.msra.mxu0 0.0
        %1602 = vmatprep.subr.mxu0 0.0
        %1603 = vmatpush1.msra.mxu0 0.0
        %1604 = vmatprep.subr.mxu0 0.0
        %1605 = vmatpush1.msra.mxu0 0.0
        %1606 = vmatprep.subr.mxu0 0.0
        %1607 = vmatpush1.msra.mxu0 0.0
        %1608 = vmatprep.subr.mxu0 0.0
        %1609 = vmatpush1.msra.mxu0 0.0
        %1610 = vmatprep.subr.mxu0 0.0
        %1611 = vmatpush1.msra.mxu0 0.0
        %1612 = vmatprep.subr.mxu0 0.0
        %1613 = vmatpush1.msra.mxu0 0.0
        %1614 = vmatprep.subr.mxu0 0.0
        %1615 = vmatpush1.msra.mxu0 0.0
        %1616 = vmatprep.subr.mxu0 0.0
        %1617 = vmatpush1.msra.mxu0 0.0
        %1618 = vmatprep.subr.mxu0 0.0
        %1619 = vmatpush1.msra.mxu0 0.0
        %1620 = vmatprep.subr.mxu0 0.0
        %1621 = vmatpush1.msra.mxu0 0.0
        %1622 = vmatprep.mubr.f32.mxu0 0.0
        %1623 = vmatmul.mubr.f32.gmra.mrb[0].mxu0 %v1552
        %v1624 = vpop.f32.mrb[0].mxu0
        %v1625 = vadd.f32 %v1548, %v1624
        %v1626 = vpop.f32.mrb[0].mxu0
        %v1627 = vadd.f32 %v1550, %v1626
        %1628 = vdwg.mxu0
        %1629 = vrot.lane.b32.xlu0 %v293, 120
        %v1630 = vpop.permute.xlu0 %1629
        %1631 = vrot.lane.b32.xlu0 %v1458, 126
        %v1632 = vpop.permute.xlu0 %1631
        %1633 = vrot.lane.b32.xlu0 %v1459, 126
        %v1634 = vpop.permute.xlu0 %1633
        %1635 = vrot.lane.b32.xlu0 %v1460, 126
        %v1636 = vpop.permute.xlu0 %1635
        %v1637 = vsel %vm617, %v1632, %v1634
        %v1638 = vsel %vm617, %v1634, %v1636
        %v1639 = vsel %vm309, %v1630, 0
        %v1641 = vsel %vm312, %v1637, 0
        %v1643 = vsel %vm312, %v1638, 0
        %1645 = vmatprep.subr.mxu0 %v1643
        %1646 = vmatpush1.msra.mxu0 %v1641
        %1647 = vmatprep.subr.mxu0 0.0
        %1648 = vmatpush1.msra.mxu0 0.0
        %1649 = vmatprep.subr.mxu0 0.0
        %1650 = vmatpush1.msra.mxu0 0.0
        %1651 = vmatprep.subr.mxu0 0.0
        %1652 = vmatpush1.msra.mxu0 0.0
        %1653 = vmatprep.subr.mxu0 0.0
        %1654 = vmatpush1.msra.mxu0 0.0
        %1655 = vmatprep.subr.mxu0 0.0
        %1656 = vmatpush1.msra.mxu0 0.0
        %1657 = vmatprep.subr.mxu0 0.0
        %1658 = vmatpush1.msra.mxu0 0.0
        %1659 = vmatprep.subr.mxu0 0.0
        %1660 = vmatpush1.msra.mxu0 0.0
        %1661 = vmatprep.subr.mxu0 0.0
        %1662 = vmatpush1.msra.mxu0 0.0
        %1663 = vmatprep.subr.mxu0 0.0
        %1664 = vmatpush1.msra.mxu0 0.0
        %1665 = vmatprep.subr.mxu0 0.0
        %1666 = vmatpush1.msra.mxu0 0.0
        %1667 = vmatprep.subr.mxu0 0.0
        %1668 = vmatpush1.msra.mxu0 0.0
        %1669 = vmatprep.subr.mxu0 0.0
        %1670 = vmatpush1.msra.mxu0 0.0
        %1671 = vmatprep.subr.mxu0 0.0
        %1672 = vmatpush1.msra.mxu0 0.0
        %1673 = vmatprep.subr.mxu0 0.0
        %1674 = vmatpush1.msra.mxu0 0.0
        %1675 = vmatprep.subr.mxu0 0.0
        %1676 = vmatpush1.msra.mxu0 0.0
        %1677 = vmatprep.subr.mxu0 0.0
        %1678 = vmatpush1.msra.mxu0 0.0
        %1679 = vmatprep.subr.mxu0 0.0
        %1680 = vmatpush1.msra.mxu0 0.0
        %1681 = vmatprep.subr.mxu0 0.0
        %1682 = vmatpush1.msra.mxu0 0.0
        %1683 = vmatprep.subr.mxu0 0.0
        %1684 = vmatpush1.msra.mxu0 0.0
        %1685 = vmatprep.subr.mxu0 0.0
        %1686 = vmatpush1.msra.mxu0 0.0
        %1687 = vmatprep.subr.mxu0 0.0
        %1688 = vmatpush1.msra.mxu0 0.0
        %1689 = vmatprep.subr.mxu0 0.0
        %1690 = vmatpush1.msra.mxu0 0.0
        %1691 = vmatprep.subr.mxu0 0.0
        %1692 = vmatpush1.msra.mxu0 0.0
        %1693 = vmatprep.subr.mxu0 0.0
        %1694 = vmatpush1.msra.mxu0 0.0
        %1695 = vmatprep.subr.mxu0 0.0
        %1696 = vmatpush1.msra.mxu0 0.0
        %1697 = vmatprep.subr.mxu0 0.0
        %1698 = vmatpush1.msra.mxu0 0.0
        %1699 = vmatprep.subr.mxu0 0.0
        %1700 = vmatpush1.msra.mxu0 0.0
        %1701 = vmatprep.subr.mxu0 0.0
        %1702 = vmatpush1.msra.mxu0 0.0
        %1703 = vmatprep.subr.mxu0 0.0
        %1704 = vmatpush1.msra.mxu0 0.0
        %1705 = vmatprep.subr.mxu0 0.0
        %1706 = vmatpush1.msra.mxu0 0.0
        %1707 = vmatprep.subr.mxu0 0.0
        %1708 = vmatpush1.msra.mxu0 0.0
        %1709 = vmatprep.mubr.f32.mxu0 0.0
        %1710 = vmatmul.mubr.f32.gmra.mrb[0].mxu0 %v1639
        %v1711 = vpop.f32.mrb[0].mxu0
        %v1712 = vadd.f32 0.0, %v1711
        %v1713 = vpop.f32.mrb[0].mxu0
        %v1714 = vadd.f32 0.0, %v1713
        %1715 = vdwg.mxu0
        %v1716 = vadd.f32 %v1625, %v1712
        %v1717 = vadd.f32 %v1627, %v1714
        %1718 = vrot.lane.b32.xlu0 %v293, 116
        %v1719 = vpop.permute.xlu0 %1718
        %1720 = vrot.lane.b32.xlu0 %v1458, 125
        %v1721 = vpop.permute.xlu0 %1720
        %1722 = vrot.lane.b32.xlu0 %v1459, 125
        %v1723 = vpop.permute.xlu0 %1722
        %1724 = vrot.lane.b32.xlu0 %v1460, 125
        %v1725 = vpop.permute.xlu0 %1724
        %v1726 = vsel %vm780, %v1721, %v1723
        %v1727 = vsel %vm780, %v1723, %v1725
        %v1728 = vsel %vm309, %v1719, 0
        %v1730 = vsel %vm312, %v1726, 0
        %v1732 = vsel %vm312, %v1727, 0
        %1734 = vmatprep.subr.mxu0 %v1732
        %1735 = vmatpush1.msra.mxu0 %v1730
        %1736 = vmatprep.subr.mxu0 0.0
        %1737 = vmatpush1.msra.mxu0 0.0
        %1738 = vmatprep.subr.mxu0 0.0
        %1739 = vmatpush1.msra.mxu0 0.0
        %1740 = vmatprep.subr.mxu0 0.0
        %1741 = vmatpush1.msra.mxu0 0.0
        %1742 = vmatprep.subr.mxu0 0.0
        %1743 = vmatpush1.msra.mxu0 0.0
        %1744 = vmatprep.subr.mxu0 0.0
        %1745 = vmatpush1.msra.mxu0 0.0
        %1746 = vmatprep.subr.mxu0 0.0
        %1747 = vmatpush1.msra.mxu0 0.0
        %1748 = vmatprep.subr.mxu0 0.0
        %1749 = vmatpush1.msra.mxu0 0.0
        %1750 = vmatprep.subr.mxu0 0.0
        %1751 = vmatpush1.msra.mxu0 0.0
        %1752 = vmatprep.subr.mxu0 0.0
        %1753 = vmatpush1.msra.mxu0 0.0
        %1754 = vmatprep.subr.mxu0 0.0
        %1755 = vmatpush1.msra.mxu0 0.0
        %1756 = vmatprep.subr.mxu0 0.0
        %1757 = vmatpush1.msra.mxu0 0.0
        %1758 = vmatprep.subr.mxu0 0.0
        %1759 = vmatpush1.msra.mxu0 0.0
        %1760 = vmatprep.subr.mxu0 0.0
        %1761 = vmatpush1.msra.mxu0 0.0
        %1762 = vmatprep.subr.mxu0 0.0
        %1763 = vmatpush1.msra.mxu0 0.0
        %1764 = vmatprep.subr.mxu0 0.0
        %1765 = vmatpush1.msra.mxu0 0.0
        %1766 = vmatprep.subr.mxu0 0.0
        %1767 = vmatpush1.msra.mxu0 0.0
        %1768 = vmatprep.subr.mxu0 0.0
        %1769 = vmatpush1.msra.mxu0 0.0
        %1770 = vmatprep.subr.mxu0 0.0
        %1771 = vmatpush1.msra.mxu0 0.0
        %1772 = vmatprep.subr.mxu0 0.0
        %1773 = vmatpush1.msra.mxu0 0.0
        %1774 = vmatprep.subr.mxu0 0.0
        %1775 = vmatpush1.msra.mxu0 0.0
        %1776 = vmatprep.subr.mxu0 0.0
        %1777 = vmatpush1.msra.mxu0 0.0
        %1778 = vmatprep.subr.mxu0 0.0
        %1779 = vmatpush1.msra.mxu0 0.0
        %1780 = vmatprep.subr.mxu0 0.0
        %1781 = vmatpush1.msra.mxu0 0.0
        %1782 = vmatprep.subr.mxu0 0.0
        %1783 = vmatpush1.msra.mxu0 0.0
        %1784 = vmatprep.subr.mxu0 0.0
        %1785 = vmatpush1.msra.mxu0 0.0
        %1786 = vmatprep.subr.mxu0 0.0
        %1787 = vmatpush1.msra.mxu0 0.0
        %1788 = vmatprep.subr.mxu0 0.0
        %1789 = vmatpush1.msra.mxu0 0.0
        %1790 = vmatprep.subr.mxu0 0.0
        %1791 = vmatpush1.msra.mxu0 0.0
        %1792 = vmatprep.subr.mxu0 0.0
        %1793 = vmatpush1.msra.mxu0 0.0
        %1794 = vmatprep.subr.mxu0 0.0
        %1795 = vmatpush1.msra.mxu0 0.0
        %1796 = vmatprep.subr.mxu0 0.0
        %1797 = vmatpush1.msra.mxu0 0.0
        %1798 = vmatprep.mubr.f32.mxu0 0.0
        %1799 = vmatmul.mubr.f32.gmra.mrb[0].mxu0 %v1728
        %v1800 = vpop.f32.mrb[0].mxu0
        %v1801 = vadd.f32 0.0, %v1800
        %v1802 = vpop.f32.mrb[0].mxu0
        %v1803 = vadd.f32 0.0, %v1802
        %1804 = vdwg.mxu0
        %v1805 = vadd.f32 %v1716, %v1801
        %v1806 = vadd.f32 %v1717, %v1803
        %1807 = vrot.lane.b32.xlu0 %v293, 112
        %v1808 = vpop.permute.xlu0 %1807
        %1809 = vrot.lane.b32.xlu0 %v1458, 124
        %v1810 = vpop.permute.xlu0 %1809
        %1811 = vrot.lane.b32.xlu0 %v1459, 124
        %v1812 = vpop.permute.xlu0 %1811
        %1813 = vrot.lane.b32.xlu0 %v1460, 124
        %v1814 = vpop.permute.xlu0 %1813
        %v1815 = vsel %vm943, %v1810, %v1812
        %v1816 = vsel %vm943, %v1812, %v1814
        %v1817 = vsel %vm309, %v1808, 0
        %v1819 = vsel %vm312, %v1815, 0
        %v1821 = vsel %vm312, %v1816, 0
        %1823 = vmatprep.subr.mxu0 %v1821
        %1824 = vmatpush1.msra.mxu0 %v1819
        %1825 = vmatprep.subr.mxu0 0.0
        %1826 = vmatpush1.msra.mxu0 0.0
        %1827 = vmatprep.subr.mxu0 0.0
        %1828 = vmatpush1.msra.mxu0 0.0
        %1829 = vmatprep.subr.mxu0 0.0
        %1830 = vmatpush1.msra.mxu0 0.0
        %1831 = vmatprep.subr.mxu0 0.0
        %1832 = vmatpush1.msra.mxu0 0.0
        %1833 = vmatprep.subr.mxu0 0.0
        %1834 = vmatpush1.msra.mxu0 0.0
        %1835 = vmatprep.subr.mxu0 0.0
        %1836 = vmatpush1.msra.mxu0 0.0
        %1837 = vmatprep.subr.mxu0 0.0
        %1838 = vmatpush1.msra.mxu0 0.0
        %1839 = vmatprep.subr.mxu0 0.0
        %1840 = vmatpush1.msra.mxu0 0.0
        %1841 = vmatprep.subr.mxu0 0.0
        %1842 = vmatpush1.msra.mxu0 0.0
        %1843 = vmatprep.subr.mxu0 0.0
        %1844 = vmatpush1.msra.mxu0 0.0
        %1845 = vmatprep.subr.mxu0 0.0
        %1846 = vmatpush1.msra.mxu0 0.0
        %1847 = vmatprep.subr.mxu0 0.0
        %1848 = vmatpush1.msra.mxu0 0.0
        %1849 = vmatprep.subr.mxu0 0.0
        %1850 = vmatpush1.msra.mxu0 0.0
        %1851 = vmatprep.subr.mxu0 0.0
        %1852 = vmatpush1.msra.mxu0 0.0
        %1853 = vmatprep.subr.mxu0 0.0
        %1854 = vmatpush1.msra.mxu0 0.0
        %1855 = vmatprep.subr.mxu0 0.0
        %1856 = vmatpush1.msra.mxu0 0.0
        %1857 = vmatprep.subr.mxu0 0.0
        %1858 = vmatpush1.msra.mxu0 0.0
        %1859 = vmatprep.subr.mxu0 0.0
        %1860 = vmatpush1.msra.mxu0 0.0
        %1861 = vmatprep.subr.mxu0 0.0
        %1862 = vmatpush1.msra.mxu0 0.0
        %1863 = vmatprep.subr.mxu0 0.0
        %1864 = vmatpush1.msra.mxu0 0.0
        %1865 = vmatprep.subr.mxu0 0.0
        %1866 = vmatpush1.msra.mxu0 0.0
        %1867 = vmatprep.subr.mxu0 0.0
        %1868 = vmatpush1.msra.mxu0 0.0
        %1869 = vmatprep.subr.mxu0 0.0
        %1870 = vmatpush1.msra.mxu0 0.0
        %1871 = vmatprep.subr.mxu0 0.0
        %1872 = vmatpush1.msra.mxu0 0.0
        %1873 = vmatprep.subr.mxu0 0.0
        %1874 = vmatpush1.msra.mxu0 0.0
        %1875 = vmatprep.subr.mxu0 0.0
        %1876 = vmatpush1.msra.mxu0 0.0
        %1877 = vmatprep.subr.mxu0 0.0
        %1878 = vmatpush1.msra.mxu0 0.0
        %1879 = vmatprep.subr.mxu0 0.0
        %1880 = vmatpush1.msra.mxu0 0.0
        %1881 = vmatprep.subr.mxu0 0.0
        %1882 = vmatpush1.msra.mxu0 0.0
        %1883 = vmatprep.subr.mxu0 0.0
        %1884 = vmatpush1.msra.mxu0 0.0
        %1885 = vmatprep.subr.mxu0 0.0
        %1886 = vmatpush1.msra.mxu0 0.0
        %1887 = vmatprep.mubr.f32.mxu0 0.0
        %1888 = vmatmul.mubr.f32.gmra.mrb[0].mxu0 %v1817
        %v1889 = vpop.f32.mrb[0].mxu0
        %v1890 = vadd.f32 0.0, %v1889
        %v1891 = vpop.f32.mrb[0].mxu0
        %v1892 = vadd.f32 0.0, %v1891
        %1893 = vdwg.mxu0
        %v1894 = vadd.f32 %v1805, %v1890
        %v1895 = vadd.f32 %v1806, %v1892
        %1896 = vrot.lane.b32.xlu0 %v293, 108
        %v1897 = vpop.permute.xlu0 %1896
        %1898 = vrot.lane.b32.xlu0 %v1458, 123
        %v1899 = vpop.permute.xlu0 %1898
        %1900 = vrot.lane.b32.xlu0 %v1459, 123
        %v1901 = vpop.permute.xlu0 %1900
        %1902 = vrot.lane.b32.xlu0 %v1460, 123
        %v1903 = vpop.permute.xlu0 %1902
        %v1904 = vsel %vm1106, %v1899, %v1901
        %v1905 = vsel %vm1106, %v1901, %v1903
        %v1906 = vsel %vm309, %v1897, 0
        %v1908 = vsel %vm312, %v1904, 0
        %v1910 = vsel %vm312, %v1905, 0
        %1912 = vmatprep.subr.mxu0 %v1910
        %1913 = vmatpush1.msra.mxu0 %v1908
        %1914 = vmatprep.subr.mxu0 0.0
        %1915 = vmatpush1.msra.mxu0 0.0
        %1916 = vmatprep.subr.mxu0 0.0
        %1917 = vmatpush1.msra.mxu0 0.0
        %1918 = vmatprep.subr.mxu0 0.0
        %1919 = vmatpush1.msra.mxu0 0.0
        %1920 = vmatprep.subr.mxu0 0.0
        %1921 = vmatpush1.msra.mxu0 0.0
        %1922 = vmatprep.subr.mxu0 0.0
        %1923 = vmatpush1.msra.mxu0 0.0
        %1924 = vmatprep.subr.mxu0 0.0
        %1925 = vmatpush1.msra.mxu0 0.0
        %1926 = vmatprep.subr.mxu0 0.0
        %1927 = vmatpush1.msra.mxu0 0.0
        %1928 = vmatprep.subr.mxu0 0.0
        %1929 = vmatpush1.msra.mxu0 0.0
        %1930 = vmatprep.subr.mxu0 0.0
        %1931 = vmatpush1.msra.mxu0 0.0
        %1932 = vmatprep.subr.mxu0 0.0
        %1933 = vmatpush1.msra.mxu0 0.0
        %1934 = vmatprep.subr.mxu0 0.0
        %1935 = vmatpush1.msra.mxu0 0.0
        %1936 = vmatprep.subr.mxu0 0.0
        %1937 = vmatpush1.msra.mxu0 0.0
        %1938 = vmatprep.subr.mxu0 0.0
        %1939 = vmatpush1.msra.mxu0 0.0
        %1940 = vmatprep.subr.mxu0 0.0
        %1941 = vmatpush1.msra.mxu0 0.0
        %1942 = vmatprep.subr.mxu0 0.0
        %1943 = vmatpush1.msra.mxu0 0.0
        %1944 = vmatprep.subr.mxu0 0.0
        %1945 = vmatpush1.msra.mxu0 0.0
        %1946 = vmatprep.subr.mxu0 0.0
        %1947 = vmatpush1.msra.mxu0 0.0
        %1948 = vmatprep.subr.mxu0 0.0
        %1949 = vmatpush1.msra.mxu0 0.0
        %1950 = vmatprep.subr.mxu0 0.0
        %1951 = vmatpush1.msra.mxu0 0.0
        %1952 = vmatprep.subr.mxu0 0.0
        %1953 = vmatpush1.msra.mxu0 0.0
        %1954 = vmatprep.subr.mxu0 0.0
        %1955 = vmatpush1.msra.mxu0 0.0
        %1956 = vmatprep.subr.mxu0 0.0
        %1957 = vmatpush1.msra.mxu0 0.0
        %1958 = vmatprep.subr.mxu0 0.0
        %1959 = vmatpush1.msra.mxu0 0.0
        %1960 = vmatprep.subr.mxu0 0.0
        %1961 = vmatpush1.msra.mxu0 0.0
        %1962 = vmatprep.subr.mxu0 0.0
        %1963 = vmatpush1.msra.mxu0 0.0
        %1964 = vmatprep.subr.mxu0 0.0
        %1965 = vmatpush1.msra.mxu0 0.0
        %1966 = vmatprep.subr.mxu0 0.0
        %1967 = vmatpush1.msra.mxu0 0.0
        %1968 = vmatprep.subr.mxu0 0.0
        %1969 = vmatpush1.msra.mxu0 0.0
        %1970 = vmatprep.subr.mxu0 0.0
        %1971 = vmatpush1.msra.mxu0 0.0
        %1972 = vmatprep.subr.mxu0 0.0
        %1973 = vmatpush1.msra.mxu0 0.0
        %1974 = vmatprep.subr.mxu0 0.0
        %1975 = vmatpush1.msra.mxu0 0.0
        %1976 = vmatprep.mubr.f32.mxu0 0.0
        %1977 = vmatmul.mubr.f32.gmra.mrb[0].mxu0 %v1906
        %v1978 = vpop.f32.mrb[0].mxu0
        %v1979 = vadd.f32 0.0, %v1978
        %v1980 = vpop.f32.mrb[0].mxu0
        %v1981 = vadd.f32 0.0, %v1980
        %1982 = vdwg.mxu0
        %v1983 = vadd.f32 %v1894, %v1979
        %v1984 = vadd.f32 %v1895, %v1981
        %1985 = vrot.lane.b32.xlu0 %v293, 104
        %v1986 = vpop.permute.xlu0 %1985
        %1987 = vrot.lane.b32.xlu0 %v1458, 122
        %v1988 = vpop.permute.xlu0 %1987
        %1989 = vrot.lane.b32.xlu0 %v1459, 122
        %v1990 = vpop.permute.xlu0 %1989
        %1991 = vrot.lane.b32.xlu0 %v1460, 122
        %v1992 = vpop.permute.xlu0 %1991
        %v1993 = vsel %vm1269, %v1988, %v1990
        %v1994 = vsel %vm1269, %v1990, %v1992
        %v1995 = vsel %vm309, %v1986, 0
        %v1997 = vsel %vm312, %v1993, 0
        %v1999 = vsel %vm312, %v1994, 0
        %2001 = vmatprep.subr.mxu0 %v1999
        %2002 = vmatpush1.msra.mxu0 %v1997
        %2003 = vmatprep.subr.mxu0 0.0
        %2004 = vmatpush1.msra.mxu0 0.0
        %2005 = vmatprep.subr.mxu0 0.0
        %2006 = vmatpush1.msra.mxu0 0.0
        %2007 = vmatprep.subr.mxu0 0.0
        %2008 = vmatpush1.msra.mxu0 0.0
        %2009 = vmatprep.subr.mxu0 0.0
        %2010 = vmatpush1.msra.mxu0 0.0
        %2011 = vmatprep.subr.mxu0 0.0
        %2012 = vmatpush1.msra.mxu0 0.0
        %2013 = vmatprep.subr.mxu0 0.0
        %2014 = vmatpush1.msra.mxu0 0.0
        %2015 = vmatprep.subr.mxu0 0.0
        %2016 = vmatpush1.msra.mxu0 0.0
        %2017 = vmatprep.subr.mxu0 0.0
        %2018 = vmatpush1.msra.mxu0 0.0
        %2019 = vmatprep.subr.mxu0 0.0
        %2020 = vmatpush1.msra.mxu0 0.0
        %2021 = vmatprep.subr.mxu0 0.0
        %2022 = vmatpush1.msra.mxu0 0.0
        %2023 = vmatprep.subr.mxu0 0.0
        %2024 = vmatpush1.msra.mxu0 0.0
        %2025 = vmatprep.subr.mxu0 0.0
        %2026 = vmatpush1.msra.mxu0 0.0
        %2027 = vmatprep.subr.mxu0 0.0
        %2028 = vmatpush1.msra.mxu0 0.0
        %2029 = vmatprep.subr.mxu0 0.0
        %2030 = vmatpush1.msra.mxu0 0.0
        %2031 = vmatprep.subr.mxu0 0.0
        %2032 = vmatpush1.msra.mxu0 0.0
        %2033 = vmatprep.subr.mxu0 0.0
        %2034 = vmatpush1.msra.mxu0 0.0
        %2035 = vmatprep.subr.mxu0 0.0
        %2036 = vmatpush1.msra.mxu0 0.0
        %2037 = vmatprep.subr.mxu0 0.0
        %2038 = vmatpush1.msra.mxu0 0.0
        %2039 = vmatprep.subr.mxu0 0.0
        %2040 = vmatpush1.msra.mxu0 0.0
        %2041 = vmatprep.subr.mxu0 0.0
        %2042 = vmatpush1.msra.mxu0 0.0
        %2043 = vmatprep.subr.mxu0 0.0
        %2044 = vmatpush1.msra.mxu0 0.0
        %2045 = vmatprep.subr.mxu0 0.0
        %2046 = vmatpush1.msra.mxu0 0.0
        %2047 = vmatprep.subr.mxu0 0.0
        %2048 = vmatpush1.msra.mxu0 0.0
        %2049 = vmatprep.subr.mxu0 0.0
        %2050 = vmatpush1.msra.mxu0 0.0
        %2051 = vmatprep.subr.mxu0 0.0
        %2052 = vmatpush1.msra.mxu0 0.0
        %2053 = vmatprep.subr.mxu0 0.0
        %2054 = vmatpush1.msra.mxu0 0.0
        %2055 = vmatprep.subr.mxu0 0.0
        %2056 = vmatpush1.msra.mxu0 0.0
        %2057 = vmatprep.subr.mxu0 0.0
        %2058 = vmatpush1.msra.mxu0 0.0
        %2059 = vmatprep.subr.mxu0 0.0
        %2060 = vmatpush1.msra.mxu0 0.0
        %2061 = vmatprep.subr.mxu0 0.0
        %2062 = vmatpush1.msra.mxu0 0.0
        %2063 = vmatprep.subr.mxu0 0.0
        %2064 = vmatpush1.msra.mxu0 0.0
        %2065 = vmatprep.mubr.f32.mxu0 0.0
        %2066 = vmatmul.mubr.f32.gmra.mrb[0].mxu0 %v1995
        %v2067 = vpop.f32.mrb[0].mxu0
        %v2068 = vadd.f32 0.0, %v2067
        %v2069 = vpop.f32.mrb[0].mxu0
        %v2070 = vadd.f32 0.0, %v2069
        %2071 = vdwg.mxu0
        %v2072 = vadd.f32 %v1983, %v2068
        %v2073 = vadd.f32 %v1984, %v2070
        %v2074 = vld [vmem:[%s4] sm:$0xf]
        %2076 = vset.pattern.permute.xlu0 0
        %2077 = vperm.xlu0 %2076, %v2074
        %v2078 = vpop.permute.xlu0 %2077
        %v2080 = vadd.f32 %v2072, %v2078
        %v2081 = vadd.f32 %v2073, %v2078
        %v2082 = vcombine.high %v256, %v256
        %v2084 = vadd.f32 %v2080, %v256
        %v2085 = vadd.f32 %v2081, %v2082
        %v2086 = vmax.f32 %v2084, 0.0
        %v2087 = vmax.f32 %v2085, 0.0
        %v2088 = vpack.c.bf16 %v2086, %v2086
        %v2089 = vpack.c.bf16 %v2087, %v2087
        %v2092 = vcombine.low %v2088, %v2089
        %v2094 = vunpack.c.l.s4 1983009808
        %v2095 = vunpack.c.0.s8 %v2094
        %v2096 = vlaneseq
        %v2097 = vshrl.u32 %v2096, 7
        %v2098 = vsub.s32 %v2095, %v2097
        %v2099 = vrot.slane %v2092, %v2098
        %2101 = vst [vmem:[%s254] sm:$0xf] %v2099
        %s2102 = sand.u32 %s154, 1
        %s2103 = scalar_lea.sflag [#allocation5], %s2102
        %s2104 = sand.u32 %s154, 1
        %s2105 = smul.addr %s2104, 4
        %s2106 = scalar_lea.vmem [#allocation6], %s2105
        // Predicated region
        $region45: #{tpu_custom_call.1} parent=39 // pred_check
          %p2107 = pneg %p164
        $region46: #{tpu_custom_call.1} parent=39 // pred_check_branch
          %2109 = sbr.rel (%p2107) target = $region48
        $region47: #{tpu_custom_call.1} parent=39 // pred_region
          %s2110 = smul.u32 2, %s27
          %s2112 = ssub.s32 64, 64
          %2113 = vsyncadd %s2103, %s2112
          %s2114 = smul.addr %s26, 2
          %s2115 = sadd.s32 %s2110, %s2114
          %s2116 = smul.addr %s2115, 32
          %s2117 = scalar_lea.hbm %s5, %s2116
          %s2119 = sshll.u32 %s2106, 4
          %s2120 = int_to_ptr.vmem [resolvable:$true] %s2119
          %2122 = dma.vmem_to_hbm [thread:$0]  %s2120, 64, %s2117, %s2103
        $region48: #{tpu_custom_call.1} parent=39 // pred_fallthru
          _
      $region40: #{tpu_custom_call.1} parent=5 // pred_fallthru
        _
      %p2123 = scmp.le.s32.totalorder 2, %s17
      // Predicated region
      $region49: #{tpu_custom_call.1} parent=5 // pred_check
        %p2124 = pneg %p2123
      $region50: #{tpu_custom_call.1} parent=5 // pred_check_branch
        %2126 = sbr.rel (%p2124) target = $region52
      $region51: #{tpu_custom_call.1} parent=5 // pred_region
        %s2127 = ssub.s32 %s17, 2
        // Predicated region
        $region53: #{tpu_custom_call.1} parent=51 // pred_check
          %p2128 = pneg %p170
        $region54: #{tpu_custom_call.1} parent=51 // pred_check_branch
          %2130 = sbr.rel (%p2128) target = $region56
        $region55: #{tpu_custom_call.1} parent=51 // pred_region
          %s2131 = sand.u32 %s155, 1
          %s2132 = scalar_lea.sflag [#allocation5], %s2131
          %s2133 = sand.u32 %s155, 1
          %s2134 = smul.addr %s2133, 4
          %s2135 = scalar_lea.vmem [#allocation6], %s2134
          %2136 = dma.done %s2132, 64
        $region56: #{tpu_custom_call.1} parent=51 // pred_fallthru
          _
      $region52: #{tpu_custom_call.1} parent=5 // pred_fallthru
        _
    $region6: #{tpu_custom_call.1} parent=1 // loop_footer
      %s21 = sadd.s32 1, %s17
    $region7: #{tpu_custom_call.1} parent=1 // loop_footer_branch
      %16 = sbr.rel target = $region3
    $region8: #{tpu_custom_call.1} parent=1 // loop_exit
      _
    %2137 = vsyncpa [#allocation4], 1
    %s2138 = scalar_lea.sflag [#allocation4], 1
    %2139 = vsyncpa %s2138, 1
    %2140 = vsyncpa [#allocation5], 1
    %s2141 = scalar_lea.sflag [#allocation5], 1
    %2142 = vsyncpa %s2141, 1

</llo_original>
